<compile_context>
chip_gen: v6e
topology: v6e:2x2x1
jax: 0.10.0
libtpu: 0.0.40
codegen_flags: <defaults>
</compile_context>

<pallas_src>
import functools

import jax
import jax.numpy as jnp
import numpy as np
from jax.experimental import pallas as pl
from jax.experimental.pallas import tpu as pltpu

# ----------------------------- configuration ------------------------------
N_AGENTS = 2
NI = 4
N = NI * N_AGENTS          # 8
N_LAYERS = 8
N_H_LAYERS = 1

IN_DIM = 48
H0, H1, H2 = 128, 64, 64

K_SHAPE = (N_H_LAYERS, N, N, 1)            # numel = 64
GG_SHAPE = (N, N)                          # numel = 64
B_SHAPE = (N_H_LAYERS, 1, N, N_LAYERS)     # numel = 64
GOUT_SHAPE = (4 * N_AGENTS, 2 * N_AGENTS)  # numel = 32

OUT_DIMS = [int(np.prod(K_SHAPE)), int(np.prod(GG_SHAPE)),
            int(np.prod(B_SHAPE)), int(np.prod(GOUT_SHAPE))]
OUT_MAX = max(OUT_DIMS)                    # 64 (per-head padded output width)
NUM_HEADS = 4

assert H1 == H2 == OUT_MAX == 64           # uniform column width of W123
W123_ROWS = H0 + H1 + H2                   # 256


def _round_up(n, m):
    return ((n + m - 1) // m) * m


# ------------------------------- kernel -----------------------------------
def controller_kernel(x_ref, w0_ref, b0_ref, w123_ref, b123_ref, o_ref):
    """One batch tile, all 4 heads.  Per-head dense stacked weights, four
    head-batched MXU dots, everything VMEM-resident across the batch grid."""
    tb = x_ref.shape[0]
    x = x_ref[...]                                                    # (tb, 48)
    xh = jnp.broadcast_to(x[None, :, :], (NUM_HEADS, tb, IN_DIM))     # (4, tb, 48)

    # Layer 0 (no tanh, matching the PyTorch forward).
    h = jnp.einsum("hbk,hkn->hbn", xh, w0_ref[...],
                   preferred_element_type=jnp.float32) + b0_ref[...]  # (4, tb, 128)

    # Layers 1-3: static, sublane-aligned slices of the packed weight buffer.
    w1 = w123_ref[:, 0:H0, :]                  # (4, 128, 64)
    w2 = w123_ref[:, H0:H0 + H1, :]            # (4,  64, 64)
    w3 = w123_ref[:, H0 + H1:W123_ROWS, :]     # (4,  64, 64)

    h = jnp.tanh(jnp.einsum("hbk,hkn->hbn", h, w1,
                            preferred_element_type=jnp.float32) + b123_ref[0])
    h = jnp.tanh(jnp.einsum("hbk,hkn->hbn", h, w2,
                            preferred_element_type=jnp.float32) + b123_ref[1])
    h = jnp.tanh(jnp.einsum("hbk,hkn->hbn", h, w3,
                            preferred_element_type=jnp.float32) + b123_ref[2])
    o_ref[...] = h                                                    # (4, tb, 64)


@functools.partial(jax.jit, static_argnames=("batch_tile",))
def nn_controller_forward(x, params, batch_tile=None):
    """x: (48,) or (B, 48) float32.  params: dict from make_params()[0].

    Returns (K, GG, b, g_out) with PyTorch shapes (a leading batch dim is
    added when x is batched)."""
    squeeze = (x.ndim == 1)
    xb = x.reshape(1, IN_DIM) if squeeze else x
    B = xb.shape[0]

    if batch_tile is None:
        tb = min(128, _round_up(B, 8))
    else:
        tb = _round_up(int(batch_tile), 8)
    Bp = _round_up(B, tb)
    if Bp != B:
        xb = jnp.pad(xb, ((0, Bp - B), (0, 0)))
    nb = Bp // tb

    grid_spec = pltpu.PrefetchScalarGridSpec(
        num_scalar_prefetch=0,
        grid=(nb,),
        in_specs=[
            pl.BlockSpec((tb, IN_DIM), lambda i: (i, 0)),                     # x tile
            pl.BlockSpec((NUM_HEADS, IN_DIM, H0), lambda i: (0, 0, 0)),       # W0 (resident)
            pl.BlockSpec((NUM_HEADS, 1, H0), lambda i: (0, 0, 0)),            # B0 (resident)
            pl.BlockSpec((NUM_HEADS, W123_ROWS, OUT_MAX), lambda i: (0, 0, 0)),  # W1|W2|W3
            pl.BlockSpec((3, NUM_HEADS, 1, OUT_MAX), lambda i: (0, 0, 0, 0)),    # B1|B2|B3
        ],
        out_specs=pl.BlockSpec((NUM_HEADS, tb, OUT_MAX), lambda i: (0, i, 0)),
    )

    out = pl.pallas_call(
        controller_kernel,
        out_shape=jax.ShapeDtypeStruct((NUM_HEADS, Bp, OUT_MAX), jnp.float32),
        grid_spec=grid_spec,
        compiler_params=pltpu.CompilerParams(
            dimension_semantics=("parallel",)),      # shards batch over 2 TCs on v7x
    )(xb, params["W0"], params["B0"], params["W123"], params["B123"])

    out = out[:, :B, :]
    shapes = [K_SHAPE, GG_SHAPE, B_SHAPE, GOUT_SHAPE]
    results = []
    for h, s in enumerate(shapes):
        flat = out[h, :, :OUT_DIMS[h]]                   # (B, numel)
        results.append(flat.reshape(s) if squeeze else flat.reshape((B,) + s))
    return tuple(results)


# --------------------------- parameter init --------------------------------
def _linear_init(key, fan_in, fan_out):
    """Deterministic init mimicking torch.nn.Linear (uniform +-1/sqrt(fan_in))."""
    kw, kb = jax.random.split(key)
    bound = 1.0 / np.sqrt(fan_in)
    w = jax.random.uniform(kw, (fan_in, fan_out), jnp.float32, -bound, bound)
    b = jax.random.uniform(kb, (fan_out,), jnp.float32, -bound, bound)
    return w, b


def make_params(key):
    """Returns (packed_params_for_kernel, per_head_params_for_reference)."""
    keys = jax.random.split(key, NUM_HEADS * 4).reshape(NUM_HEADS, 4, 2)
    heads = []
    for h in range(NUM_HEADS):
        w0, b0 = _linear_init(keys[h, 0], IN_DIM, H0)
        w1, b1 = _linear_init(keys[h, 1], H0, H1)
        w2, b2 = _linear_init(keys[h, 2], H1, H2)
        w3, b3 = _linear_init(keys[h, 3], H2, OUT_DIMS[h])
        heads.append(dict(w0=w0, b0=b0, w1=w1, b1=b1,
                          w2=w2, b2=b2, w3=w3, b3=b3))

    # Stacked dense per-head weights (no block-diagonal zero padding).
    W0 = jnp.stack([hd["w0"] for hd in heads])                       # (4, 48, 128)
    B0 = jnp.stack([hd["b0"][None, :] for hd in heads])              # (4, 1, 128)

    # Head 3 (g_out) output width 32 -> padded to OUT_MAX=64 (tanh(0)=0, sliced away).
    w3_pad = [jnp.pad(hd["w3"], ((0, 0), (0, OUT_MAX - hd["w3"].shape[1])))
              for hd in heads]
    b3_pad = [jnp.pad(hd["b3"], (0, OUT_MAX - hd["b3"].shape[0])) for hd in heads]

    # Single packed buffer for layers 1-3 (rows 0:128 = W1, 128:192 = W2, 192:256 = W3).
    W123 = jnp.concatenate([
        jnp.stack([hd["w1"] for hd in heads]),                       # (4, 128, 64)
        jnp.stack([hd["w2"] for hd in heads]),                       # (4,  64, 64)
        jnp.stack(w3_pad),                                           # (4,  64, 64)
    ], axis=1)                                                       # (4, 256, 64)
    B123 = jnp.stack([
        jnp.stack([hd["b1"][None, :] for hd in heads]),              # (4, 1, 64)
        jnp.stack([hd["b2"][None, :] for hd in heads]),
        jnp.stack([bp[None, :] for bp in b3_pad]),
    ])                                                               # (3, 4, 1, 64)

    packed = {"W0": W0, "B0": B0, "W123": W123, "B123": B123}
    return packed, heads


# ------------------------------ reference ----------------------------------
def reference_forward(x, heads):
    """Pure-JAX per-head reference matching the PyTorch forward exactly."""
    xb = x.reshape(1, IN_DIM) if x.ndim == 1 else x
    outs = []
    for hd in heads:
        y = xb @ hd["w0"] + hd["b0"]            # no tanh on first layer
        y = jnp.tanh(y @ hd["w1"] + hd["b1"])
        y = jnp.tanh(y @ hd["w2"] + hd["b2"])
        y = jnp.tanh(y @ hd["w3"] + hd["b3"])
        outs.append(y)
    shapes = [K_SHAPE, GG_SHAPE, B_SHAPE, GOUT_SHAPE]
    if x.ndim == 1:
        return tuple(o[0].reshape(s) for o, s in zip(outs, shapes))
    B = xb.shape[0]
    return tuple(o.reshape((B,) + s) for o, s in zip(outs, shapes))


# -------------------------------- main --------------------------------------
if __name__ == "__main__":
    key = jax.random.PRNGKey(0)
    k_x, k_b, k_p = jax.random.split(key, 3)
    params, head_params = make_params(k_p)

    # --- single state, exactly the PyTorch usage: x of shape (48,) ----------
    x1 = jax.random.normal(k_x, (IN_DIM,), jnp.float32)
    outs1 = nn_controller_forward(x1, params)
    jax.block_until_ready(outs1)
    refs1 = reference_forward(x1, head_params)
    for o, r, s in zip(outs1, refs1, [K_SHAPE, GG_SHAPE, B_SHAPE, GOUT_SHAPE]):
        assert o.shape == s, (o.shape, s)
        np.testing.assert_allclose(np.asarray(o), np.asarray(r), atol=1e-5, rtol=1e-5)

    # --- small batch: 16 states, tile=8 -> 2-step "parallel" grid with
    #     VMEM-resident weights (constant index_map) ---------------------------
    xb = jax.random.normal(k_b, (16, IN_DIM), jnp.float32)
    outs_b = nn_controller_forward(xb, params, batch_tile=8)
    jax.block_until_ready(outs_b)
    refs_b = reference_forward(xb, head_params)
    for o, r in zip(outs_b, refs_b):
        assert o.shape == r.shape, (o.shape, r.shape)
        np.testing.assert_allclose(np.asarray(o), np.asarray(r), atol=1e-5, rtol=1e-5)

    print("KERNEL_OK")
</pallas_src>

<mosaic_0001>
module attributes {stable_mosaic.version = 11 : i64} {
  func.func @controller_kernel(%arg0: i32, %arg1: memref<8x48xf32, #tpu.memory_space<vmem>>, %arg2: memref<4x48x128xf32, #tpu.memory_space<vmem>>, %arg3: memref<4x1x128xf32, #tpu.memory_space<vmem>>, %arg4: memref<4x256x64xf32, #tpu.memory_space<vmem>>, %arg5: memref<3x4x1x64xf32, #tpu.memory_space<vmem>>, %arg6: memref<4x8x64xf32, #tpu.memory_space<vmem>>) attributes {dimension_semantics = [#tpu.dimension_semantics<parallel>], iteration_bounds = array<i64: 1>, scalar_prefetch = 0 : i64, scratch_operands = 0 : i64, tpu.core_type = #tpu.core_type<tc>, window_params = [{transform_indices = @transform_0, window_bounds = array<i64: 8, 48>}, {pipeline_mode = #tpu.pipeline_mode<synchronous>, transform_indices = @transform_1, window_bounds = array<i64: 4, 48, 128>}, {pipeline_mode = #tpu.pipeline_mode<synchronous>, transform_indices = @transform_2, window_bounds = array<i64: 4, 1, 128>}, {pipeline_mode = #tpu.pipeline_mode<synchronous>, transform_indices = @transform_3, window_bounds = array<i64: 4, 256, 64>}, {pipeline_mode = #tpu.pipeline_mode<synchronous>, transform_indices = @transform_4, window_bounds = array<i64: 3, 4, 1, 64>}, {transform_indices = @transform_5, window_bounds = array<i64: 4, 8, 64>}]} {
    %c0 = arith.constant 0 : index
    %c0_0 = arith.constant 0 : index
    %0 = vector.load %arg1[%c0, %c0_0] : memref<8x48xf32, #tpu.memory_space<vmem>>, vector<8x48xf32>
    %1 = vector.shape_cast %0 : vector<8x48xf32> to vector<1x8x48xf32>
    %2 = vector.shape_cast %1 : vector<1x8x48xf32> to vector<1x8x48xf32>
    %3 = vector.broadcast %2 : vector<1x8x48xf32> to vector<4x8x48xf32>
    %c0_1 = arith.constant 0 : index
    %c0_2 = arith.constant 0 : index
    %c0_3 = arith.constant 0 : index
    %4 = vector.load %arg2[%c0_1, %c0_2, %c0_3] : memref<4x48x128xf32, #tpu.memory_space<vmem>>, vector<4x48x128xf32>
    "tpu.trace_start"() <{level = 10 : i32, message = "hbk,hkn->hbn"}> : () -> ()
    %cst = arith.constant dense<0.000000e+00> : vector<4x8x128xf32>
    %5 = tpu.matmul %3, %4, %cst {dimension_numbers = #tpu.dot_dimension_numbers<[2], [1], [1], [2], [0, 0, 0, 1, 1, 2], [0], [0]>} : vector<4x8x48xf32>, vector<4x48x128xf32>, vector<4x8x128xf32> -> vector<4x8x128xf32>
    "tpu.trace_stop"() : () -> ()
    %c0_4 = arith.constant 0 : index
    %c0_5 = arith.constant 0 : index
    %c0_6 = arith.constant 0 : index
    %6 = vector.load %arg3[%c0_4, %c0_5, %c0_6] : memref<4x1x128xf32, #tpu.memory_space<vmem>>, vector<4x1x128xf32>
    %7 = vector.broadcast %6 : vector<4x1x128xf32> to vector<4x8x128xf32>
    %8 = arith.addf %5, %7 : vector<4x8x128xf32>
    %c0_7 = arith.constant 0 : index
    %c0_8 = arith.constant 0 : index
    %c0_9 = arith.constant 0 : index
    %9 = vector.load %arg4[%c0_7, %c0_8, %c0_9] : memref<4x256x64xf32, #tpu.memory_space<vmem>>, vector<4x128x64xf32>
    %c0_10 = arith.constant 0 : index
    %c128 = arith.constant 128 : index
    %c0_11 = arith.constant 0 : index
    %10 = vector.load %arg4[%c0_10, %c128, %c0_11] : memref<4x256x64xf32, #tpu.memory_space<vmem>>, vector<4x64x64xf32>
    %c0_12 = arith.constant 0 : index
    %c192 = arith.constant 192 : index
    %c0_13 = arith.constant 0 : index
    %11 = vector.load %arg4[%c0_12, %c192, %c0_13] : memref<4x256x64xf32, #tpu.memory_space<vmem>>, vector<4x64x64xf32>
    "tpu.trace_start"() <{level = 10 : i32, message = "hbk,hkn->hbn"}> : () -> ()
    %cst_14 = arith.constant dense<0.000000e+00> : vector<4x8x64xf32>
    %12 = tpu.matmul %8, %9, %cst_14 {dimension_numbers = #tpu.dot_dimension_numbers<[2], [1], [1], [2], [0, 0, 0, 1, 1, 2], [0], [0]>} : vector<4x8x128xf32>, vector<4x128x64xf32>, vector<4x8x64xf32> -> vector<4x8x64xf32>
    "tpu.trace_stop"() : () -> ()
    %c0_15 = arith.constant 0 : index
    %c0_16 = arith.constant 0 : index
    %c0_17 = arith.constant 0 : index
    %c0_18 = arith.constant 0 : index
    %13 = vector.load %arg5[%c0_15, %c0_16, %c0_17, %c0_18] : memref<3x4x1x64xf32, #tpu.memory_space<vmem>>, vector<1x4x1x64xf32>
    %14 = vector.shape_cast %13 : vector<1x4x1x64xf32> to vector<4x1x64xf32>
    %15 = vector.broadcast %14 : vector<4x1x64xf32> to vector<4x8x64xf32>
    %16 = arith.addf %12, %15 : vector<4x8x64xf32>
    %17 = math.tanh %16 : vector<4x8x64xf32>
    "tpu.trace_start"() <{level = 10 : i32, message = "hbk,hkn->hbn"}> : () -> ()
    %cst_19 = arith.constant dense<0.000000e+00> : vector<4x8x64xf32>
    %18 = tpu.matmul %17, %10, %cst_19 {dimension_numbers = #tpu.dot_dimension_numbers<[2], [1], [1], [2], [0, 0, 0, 1, 1, 2], [0], [0]>} : vector<4x8x64xf32>, vector<4x64x64xf32>, vector<4x8x64xf32> -> vector<4x8x64xf32>
    "tpu.trace_stop"() : () -> ()
    %c1 = arith.constant 1 : index
    %c0_20 = arith.constant 0 : index
    %c0_21 = arith.constant 0 : index
    %c0_22 = arith.constant 0 : index
    %19 = vector.load %arg5[%c1, %c0_20, %c0_21, %c0_22] : memref<3x4x1x64xf32, #tpu.memory_space<vmem>>, vector<1x4x1x64xf32>
    %20 = vector.shape_cast %19 : vector<1x4x1x64xf32> to vector<4x1x64xf32>
    %21 = vector.broadcast %20 : vector<4x1x64xf32> to vector<4x8x64xf32>
    %22 = arith.addf %18, %21 : vector<4x8x64xf32>
    %23 = math.tanh %22 : vector<4x8x64xf32>
    "tpu.trace_start"() <{level = 10 : i32, message = "hbk,hkn->hbn"}> : () -> ()
    %cst_23 = arith.constant dense<0.000000e+00> : vector<4x8x64xf32>
    %24 = tpu.matmul %23, %11, %cst_23 {dimension_numbers = #tpu.dot_dimension_numbers<[2], [1], [1], [2], [0, 0, 0, 1, 1, 2], [0], [0]>} : vector<4x8x64xf32>, vector<4x64x64xf32>, vector<4x8x64xf32> -> vector<4x8x64xf32>
    "tpu.trace_stop"() : () -> ()
    %c2 = arith.constant 2 : index
    %c0_24 = arith.constant 0 : index
    %c0_25 = arith.constant 0 : index
    %c0_26 = arith.constant 0 : index
    %25 = vector.load %arg5[%c2, %c0_24, %c0_25, %c0_26] : memref<3x4x1x64xf32, #tpu.memory_space<vmem>>, vector<1x4x1x64xf32>
    %26 = vector.shape_cast %25 : vector<1x4x1x64xf32> to vector<4x1x64xf32>
    %27 = vector.broadcast %26 : vector<4x1x64xf32> to vector<4x8x64xf32>
    %28 = arith.addf %24, %27 : vector<4x8x64xf32>
    %29 = math.tanh %28 : vector<4x8x64xf32>
    %c0_27 = arith.constant 0 : index
    %c0_28 = arith.constant 0 : index
    %c0_29 = arith.constant 0 : index
    %30 = vector.load %arg6[%c0_27, %c0_28, %c0_29] : memref<4x8x64xf32, #tpu.memory_space<vmem>>, vector<4x8x64xf32>
    tpu.vector_store %arg6[%c0_27, %c0_28, %c0_29], %29 {strides = array<i32>} : memref<4x8x64xf32, #tpu.memory_space<vmem>>, vector<4x8x64xf32>,
    return
  }
  func.func @transform_0(%arg0: i32) -> (i32, i32) {
    %c0_i32 = arith.constant 0 : i32
    %c0_i32_0 = arith.constant 0 : i32
    return %arg0, %c0_i32 : i32, i32
  }
  func.func @transform_1(%arg0: i32) -> (i32, i32, i32) {
    %c0_i32 = arith.constant 0 : i32
    %c0_i32_0 = arith.constant 0 : i32
    %c0_i32_1 = arith.constant 0 : i32
    %c0_i32_2 = arith.constant 0 : i32
    return %c0_i32, %c0_i32_0, %c0_i32_1 : i32, i32, i32
  }
  func.func @transform_2(%arg0: i32) -> (i32, i32, i32) {
    %c0_i32 = arith.constant 0 : i32
    %c0_i32_0 = arith.constant 0 : i32
    %c0_i32_1 = arith.constant 0 : i32
    %c0_i32_2 = arith.constant 0 : i32
    return %c0_i32, %c0_i32_0, %c0_i32_1 : i32, i32, i32
  }
  func.func @transform_3(%arg0: i32) -> (i32, i32, i32) {
    %c0_i32 = arith.constant 0 : i32
    %c0_i32_0 = arith.constant 0 : i32
    %c0_i32_1 = arith.constant 0 : i32
    %c0_i32_2 = arith.constant 0 : i32
    return %c0_i32, %c0_i32_0, %c0_i32_1 : i32, i32, i32
  }
  func.func @transform_4(%arg0: i32) -> (i32, i32, i32, i32) {
    %c0_i32 = arith.constant 0 : i32
    %c0_i32_0 = arith.constant 0 : i32
    %c0_i32_1 = arith.constant 0 : i32
    %c0_i32_2 = arith.constant 0 : i32
    %c0_i32_3 = arith.constant 0 : i32
    return %c0_i32, %c0_i32_0, %c0_i32_1, %c0_i32_2 : i32, i32, i32, i32
  }
  func.func @transform_5(%arg0: i32) -> (i32, i32, i32) {
    %c0_i32 = arith.constant 0 : i32
    %c0_i32_0 = arith.constant 0 : i32
    %c0_i32_1 = arith.constant 0 : i32
    return %c0_i32, %arg0, %c0_i32_0 : i32, i32, i32
  }
}

</mosaic_0001>

<llo_original>
// kernel: squeeze.6
$region0: #{squeeze.6}
  %s0 = inlined_call_operand.vmem [shape: f32[64], index: 0, kind: input, shape index: {}]
  %s1 = inlined_call_operand.hbm [shape: f32[1,1,8,8], index: 1, kind: output, shape index: {}]
  $region1: #{squeeze.6} parent=0
    #allocation0 [shape = 'u8[4096]{0}', space=vmem, size = 0x1000, scoped, tag = 'operand span for operand 1']
    #allocation1 [shape = 's32[1]{0}', space=sflag, size = 0x4, scoped, tag = 'scoped memory for squeeze.6']
    #allocation2 [shape = 'u8[4096]{0}', space=vmem, size = 0x1000, scoped, tag = 'scoped mem for input reshape']
    %2 = vsyncpa [#allocation1], 0
    %s4 = sshll.u32 1, 1
    %s5 = ssub.s32 %s4, 1
    %v6 = vld [vmem:[%s0] sm:%s5]
    %7 = vst [vmem:[#allocation2] sm:%s5] %v6
    %v8 = vld [vmem:[#allocation2] sm:$0x1]
    %vm9 = vcmask 64512
    %10 = vst.msk [vmem:[#allocation0] sm:$0x1] %vm9, %v8
    %v11 = vld [vmem:[#allocation2] sm:$0x1]
    %12 = vrot.lane.b32.xlu0 %v11, 120
    %v13 = vpop.permute.xlu0 %12
    %vm14 = vcmask 64512
    %s15 = scalar_lea.vmem [#allocation0], 1
    %16 = vst.msk [vmem:[%s15] sm:$0x1] %vm14, %v13
    %v17 = vld [vmem:[#allocation2] sm:$0x1]
    %18 = vrot.lane.b32.xlu0 %v17, 112
    %v19 = vpop.permute.xlu0 %18
    %vm20 = vcmask 64512
    %s21 = scalar_lea.vmem [#allocation0], 2
    %22 = vst.msk [vmem:[%s21] sm:$0x1] %vm20, %v19
    %v23 = vld [vmem:[#allocation2] sm:$0x1]
    %24 = vrot.lane.b32.xlu0 %v23, 104
    %v25 = vpop.permute.xlu0 %24
    %vm26 = vcmask 64512
    %s27 = scalar_lea.vmem [#allocation0], 3
    %28 = vst.msk [vmem:[%s27] sm:$0x1] %vm26, %v25
    %v29 = vld [vmem:[#allocation2] sm:$0x1]
    %30 = vrot.lane.b32.xlu0 %v29, 96
    %v31 = vpop.permute.xlu0 %30
    %vm32 = vcmask 64512
    %s33 = scalar_lea.vmem [#allocation0], 4
    %34 = vst.msk [vmem:[%s33] sm:$0x1] %vm32, %v31
    %v35 = vld [vmem:[#allocation2] sm:$0x1]
    %36 = vrot.lane.b32.xlu0 %v35, 88
    %v37 = vpop.permute.xlu0 %36
    %vm38 = vcmask 64512
    %s39 = scalar_lea.vmem [#allocation0], 5
    %40 = vst.msk [vmem:[%s39] sm:$0x1] %vm38, %v37
    %v41 = vld [vmem:[#allocation2] sm:$0x1]
    %42 = vrot.lane.b32.xlu0 %v41, 80
    %v43 = vpop.permute.xlu0 %42
    %vm44 = vcmask 64512
    %s45 = scalar_lea.vmem [#allocation0], 6
    %46 = vst.msk [vmem:[%s45] sm:$0x1] %vm44, %v43
    %v47 = vld [vmem:[#allocation2] sm:$0x1]
    %48 = vrot.lane.b32.xlu0 %v47, 72
    %v49 = vpop.permute.xlu0 %48
    %vm50 = vcmask 64512
    %s51 = scalar_lea.vmem [#allocation0], 7
    %52 = vst.msk [vmem:[%s51] sm:$0x1] %vm50, %v49
    %s54 = ssub.s32 128, 128
    %55 = vsyncadd [#allocation1], %s54
    %s57 = sshll.u32 [#allocation0], 4
    %s58 = int_to_ptr.vmem [resolvable:$true] %s57
    %60 = dma.vmem_to_hbm [thread:$0]  %s58, 128, %s1, [#allocation1]
    %61 = dma.done [#allocation1], 128
    %62 = vsyncpa [#allocation1], 1

// kernel: squeeze.7
$region0: #{squeeze.7}
  %s0 = inlined_call_operand.vmem [shape: f32[32], index: 0, kind: input, shape index: {}]
  %s1 = inlined_call_operand.vmem [shape: f32[8,4], index: 1, kind: output, shape index: {}]
  $region1: #{squeeze.7} parent=0
    #allocation0 [shape = 'u8[4096]{0}', space=vmem, size = 0x1000, scoped, tag = 'scoped mem for input reshape']
    %s3 = sshll.u32 1, 1
    %s4 = ssub.s32 %s3, 1
    %v5 = vld [vmem:[%s0] sm:%s4]
    %6 = vst [vmem:[#allocation0] sm:%s4] %v5
    %v7 = vld [vmem:[#allocation0] sm:$0x1]
    %vm8 = vcmask 31744
    %9 = vst.msk [vmem:[%s1] sm:$0x1] %vm8, %v7
    %v10 = vld [vmem:[#allocation0] sm:$0x1]
    %11 = vrot.lane.b32.xlu0 %v10, 124
    %v12 = vpop.permute.xlu0 %11
    %vm13 = vcmask 31744
    %s14 = scalar_lea.vmem %s1, 1
    %15 = vst.msk [vmem:[%s14] sm:$0x1] %vm13, %v12
    %v16 = vld [vmem:[#allocation0] sm:$0x1]
    %17 = vrot.lane.b32.xlu0 %v16, 120
    %v18 = vpop.permute.xlu0 %17
    %vm19 = vcmask 31744
    %s20 = scalar_lea.vmem %s1, 2
    %21 = vst.msk [vmem:[%s20] sm:$0x1] %vm19, %v18
    %v22 = vld [vmem:[#allocation0] sm:$0x1]
    %23 = vrot.lane.b32.xlu0 %v22, 116
    %v24 = vpop.permute.xlu0 %23
    %vm25 = vcmask 31744
    %s26 = scalar_lea.vmem %s1, 3
    %27 = vst.msk [vmem:[%s26] sm:$0x1] %vm25, %v24
    %v28 = vld [vmem:[#allocation0] sm:$0x1]
    %29 = vrot.lane.b32.xlu0 %v28, 112
    %v30 = vpop.permute.xlu0 %29
    %vm31 = vcmask 31744
    %s32 = scalar_lea.vmem %s1, 4
    %33 = vst.msk [vmem:[%s32] sm:$0x1] %vm31, %v30
    %v34 = vld [vmem:[#allocation0] sm:$0x1]
    %35 = vrot.lane.b32.xlu0 %v34, 108
    %v36 = vpop.permute.xlu0 %35
    %vm37 = vcmask 31744
    %s38 = scalar_lea.vmem %s1, 5
    %39 = vst.msk [vmem:[%s38] sm:$0x1] %vm37, %v36
    %v40 = vld [vmem:[#allocation0] sm:$0x1]
    %41 = vrot.lane.b32.xlu0 %v40, 104
    %v42 = vpop.permute.xlu0 %41
    %vm43 = vcmask 31744
    %s44 = scalar_lea.vmem %s1, 6
    %45 = vst.msk [vmem:[%s44] sm:$0x1] %vm43, %v42
    %v46 = vld [vmem:[#allocation0] sm:$0x1]
    %47 = vrot.lane.b32.xlu0 %v46, 100
    %v48 = vpop.permute.xlu0 %47
    %vm49 = vcmask 31744
    %s50 = scalar_lea.vmem %s1, 7
    %51 = vst.msk [vmem:[%s50] sm:$0x1] %vm49, %v48

// kernel: squeeze.5
$region0: #{squeeze.5}
  %s0 = inlined_call_operand.vmem [shape: f32[64], index: 0, kind: input, shape index: {}]
  %s1 = inlined_call_operand.hbm [shape: f32[8,8], index: 1, kind: output, shape index: {}]
  $region1: #{squeeze.5} parent=0
    #allocation0 [shape = 'u8[4096]{0}', space=vmem, size = 0x1000, scoped, tag = 'operand span for operand 1']
    #allocation1 [shape = 's32[1]{0}', space=sflag, size = 0x4, scoped, tag = 'scoped memory for squeeze.5']
    #allocation2 [shape = 'u8[4096]{0}', space=vmem, size = 0x1000, scoped, tag = 'scoped mem for input reshape']
    %2 = vsyncpa [#allocation1], 0
    %s4 = sshll.u32 1, 1
    %s5 = ssub.s32 %s4, 1
    %v6 = vld [vmem:[%s0] sm:%s5]
    %7 = vst [vmem:[#allocation2] sm:%s5] %v6
    %v8 = vld [vmem:[#allocation2] sm:$0x1]
    %vm9 = vcmask 64512
    %10 = vst.msk [vmem:[#allocation0] sm:$0x1] %vm9, %v8
    %v11 = vld [vmem:[#allocation2] sm:$0x1]
    %12 = vrot.lane.b32.xlu0 %v11, 120
    %v13 = vpop.permute.xlu0 %12
    %vm14 = vcmask 64512
    %s15 = scalar_lea.vmem [#allocation0], 1
    %16 = vst.msk [vmem:[%s15] sm:$0x1] %vm14, %v13
    %v17 = vld [vmem:[#allocation2] sm:$0x1]
    %18 = vrot.lane.b32.xlu0 %v17, 112
    %v19 = vpop.permute.xlu0 %18
    %vm20 = vcmask 64512
    %s21 = scalar_lea.vmem [#allocation0], 2
    %22 = vst.msk [vmem:[%s21] sm:$0x1] %vm20, %v19
    %v23 = vld [vmem:[#allocation2] sm:$0x1]
    %24 = vrot.lane.b32.xlu0 %v23, 104
    %v25 = vpop.permute.xlu0 %24
    %vm26 = vcmask 64512
    %s27 = scalar_lea.vmem [#allocation0], 3
    %28 = vst.msk [vmem:[%s27] sm:$0x1] %vm26, %v25
    %v29 = vld [vmem:[#allocation2] sm:$0x1]
    %30 = vrot.lane.b32.xlu0 %v29, 96
    %v31 = vpop.permute.xlu0 %30
    %vm32 = vcmask 64512
    %s33 = scalar_lea.vmem [#allocation0], 4
    %34 = vst.msk [vmem:[%s33] sm:$0x1] %vm32, %v31
    %v35 = vld [vmem:[#allocation2] sm:$0x1]
    %36 = vrot.lane.b32.xlu0 %v35, 88
    %v37 = vpop.permute.xlu0 %36
    %vm38 = vcmask 64512
    %s39 = scalar_lea.vmem [#allocation0], 5
    %40 = vst.msk [vmem:[%s39] sm:$0x1] %vm38, %v37
    %v41 = vld [vmem:[#allocation2] sm:$0x1]
    %42 = vrot.lane.b32.xlu0 %v41, 80
    %v43 = vpop.permute.xlu0 %42
    %vm44 = vcmask 64512
    %s45 = scalar_lea.vmem [#allocation0], 6
    %46 = vst.msk [vmem:[%s45] sm:$0x1] %vm44, %v43
    %v47 = vld [vmem:[#allocation2] sm:$0x1]
    %48 = vrot.lane.b32.xlu0 %v47, 72
    %v49 = vpop.permute.xlu0 %48
    %vm50 = vcmask 64512
    %s51 = scalar_lea.vmem [#allocation0], 7
    %52 = vst.msk [vmem:[%s51] sm:$0x1] %vm50, %v49
    %s54 = ssub.s32 128, 128
    %55 = vsyncadd [#allocation1], %s54
    %s57 = sshll.u32 [#allocation0], 4
    %s58 = int_to_ptr.vmem [resolvable:$true] %s57
    %60 = dma.vmem_to_hbm [thread:$0]  %s58, 128, %s1, [#allocation1]
    %61 = dma.done [#allocation1], 128
    %62 = vsyncpa [#allocation1], 1

// kernel: squeeze.4
$region0: #{squeeze.4}
  %s0 = inlined_call_operand.vmem [shape: f32[64], index: 0, kind: input, shape index: {}]
  %s1 = inlined_call_operand.hbm [shape: f32[1,8,8,1], index: 1, kind: output, shape index: {}]
  $region1: #{squeeze.4} parent=0
    #allocation0 [shape = 'u8[4096]{0}', space=vmem, size = 0x1000, scoped, tag = 'operand span for operand 1']
    #allocation1 [shape = 's32[1]{0}', space=sflag, size = 0x4, scoped, tag = 'scoped memory for squeeze.4']
    #allocation2 [shape = 'u8[4096]{0}', space=vmem, size = 0x1000, scoped, tag = 'scoped mem for input reshape']
    %2 = vsyncpa [#allocation1], 0
    %s4 = sshll.u32 1, 1
    %s5 = ssub.s32 %s4, 1
    %v6 = vld [vmem:[%s0] sm:%s5]
    %7 = vst [vmem:[#allocation2] sm:%s5] %v6
    %v8 = vld [vmem:[#allocation2] sm:$0x1]
    %vm9 = vcmask 64512
    %10 = vst.msk [vmem:[#allocation0] sm:$0x1] %vm9, %v8
    %v11 = vld [vmem:[#allocation2] sm:$0x1]
    %12 = vrot.lane.b32.xlu0 %v11, 120
    %v13 = vpop.permute.xlu0 %12
    %vm14 = vcmask 64512
    %s15 = scalar_lea.vmem [#allocation0], 1
    %16 = vst.msk [vmem:[%s15] sm:$0x1] %vm14, %v13
    %v17 = vld [vmem:[#allocation2] sm:$0x1]
    %18 = vrot.lane.b32.xlu0 %v17, 112
    %v19 = vpop.permute.xlu0 %18
    %vm20 = vcmask 64512
    %s21 = scalar_lea.vmem [#allocation0], 2
    %22 = vst.msk [vmem:[%s21] sm:$0x1] %vm20, %v19
    %v23 = vld [vmem:[#allocation2] sm:$0x1]
    %24 = vrot.lane.b32.xlu0 %v23, 104
    %v25 = vpop.permute.xlu0 %24
    %vm26 = vcmask 64512
    %s27 = scalar_lea.vmem [#allocation0], 3
    %28 = vst.msk [vmem:[%s27] sm:$0x1] %vm26, %v25
    %v29 = vld [vmem:[#allocation2] sm:$0x1]
    %30 = vrot.lane.b32.xlu0 %v29, 96
    %v31 = vpop.permute.xlu0 %30
    %vm32 = vcmask 64512
    %s33 = scalar_lea.vmem [#allocation0], 4
    %34 = vst.msk [vmem:[%s33] sm:$0x1] %vm32, %v31
    %v35 = vld [vmem:[#allocation2] sm:$0x1]
    %36 = vrot.lane.b32.xlu0 %v35, 88
    %v37 = vpop.permute.xlu0 %36
    %vm38 = vcmask 64512
    %s39 = scalar_lea.vmem [#allocation0], 5
    %40 = vst.msk [vmem:[%s39] sm:$0x1] %vm38, %v37
    %v41 = vld [vmem:[#allocation2] sm:$0x1]
    %42 = vrot.lane.b32.xlu0 %v41, 80
    %v43 = vpop.permute.xlu0 %42
    %vm44 = vcmask 64512
    %s45 = scalar_lea.vmem [#allocation0], 6
    %46 = vst.msk [vmem:[%s45] sm:$0x1] %vm44, %v43
    %v47 = vld [vmem:[#allocation2] sm:$0x1]
    %48 = vrot.lane.b32.xlu0 %v47, 72
    %v49 = vpop.permute.xlu0 %48
    %vm50 = vcmask 64512
    %s51 = scalar_lea.vmem [#allocation0], 7
    %52 = vst.msk [vmem:[%s51] sm:$0x1] %vm50, %v49
    %s54 = ssub.s32 128, 128
    %55 = vsyncadd [#allocation1], %s54
    %s57 = sshll.u32 [#allocation0], 4
    %s58 = int_to_ptr.vmem [resolvable:$true] %s57
    %60 = dma.vmem_to_hbm [thread:$0]  %s58, 128, %s1, [#allocation1]
    %61 = dma.done [#allocation1], 128
    %62 = vsyncpa [#allocation1], 1

// kernel: nn_controller_forward.1
$region0: #{nn_controller_forward.1}
  #allocation0 [shape = 'u32[]', space=smem, size = 0x4, offset = 0x4, fixed_abs, tag = 'smem constant byte address 0x4 - core index']
  #allocation1 [shape = 'u32[144,128]{1,0:T(1,128)}', space=vmem, size = 0x12000, scoped, tag = 'internal scratch']
  %s0 = inlined_call_operand.vmem [shape: f32[8,48], index: 0, kind: input, shape index: {}]
  %s1 = inlined_call_operand.vmem [shape: f32[4,48,128], index: 1, kind: input, shape index: {}]
  %s2 = inlined_call_operand.vmem [shape: f32[4,1,128], index: 2, kind: input, shape index: {}]
  %s3 = inlined_call_operand.vmem [shape: f32[4,256,64], index: 3, kind: input, shape index: {}]
  %s4 = inlined_call_operand.vmem [shape: f32[3,4,1,64], index: 4, kind: input, shape index: {}]
  %s5 = inlined_call_operand.vmem [shape: f32[4,8,64], index: 5, kind: output, shape index: {}]
  %s6 = sld [smem:[#allocation0]]
  $region30: #{nn_controller_forward.1} parent=0
    _
  %s8 = ssub.s32 1, %s6
  %s9 = scalar_select 0, %s8, %s6
  // Predicated region
  $region2: #{nn_controller_forward.1} parent=0 // pred_check
    _
  $region3: #{nn_controller_forward.1} parent=0 // pred_check_branch
    %11 = sbr.rel (0) target = $region5
  $region4: #{nn_controller_forward.1} parent=0 // pred_region
    _
  $region5: #{nn_controller_forward.1} parent=0 // pred_fallthru
    _
  // Predicated region
  $region6: #{nn_controller_forward.1} parent=0 // pred_check
    _
  $region7: #{nn_controller_forward.1} parent=0 // pred_check_branch
    %13 = sbr.rel (0) target = $region9
  $region8: #{nn_controller_forward.1} parent=0 // pred_region
    _
  $region9: #{nn_controller_forward.1} parent=0 // pred_fallthru
    _
  // Predicated region
  $region10: #{nn_controller_forward.1} parent=0 // pred_check
    _
  $region11: #{nn_controller_forward.1} parent=0 // pred_check_branch
    %15 = sbr.rel (0) target = $region13
  $region12: #{nn_controller_forward.1} parent=0 // pred_region
    _
  $region13: #{nn_controller_forward.1} parent=0 // pred_fallthru
    _
  // Predicated region
  $region14: #{nn_controller_forward.1} parent=0 // pred_check
    _
  $region15: #{nn_controller_forward.1} parent=0 // pred_check_branch
    %17 = sbr.rel (0) target = $region17
  $region16: #{nn_controller_forward.1} parent=0 // pred_region
    _
  $region17: #{nn_controller_forward.1} parent=0 // pred_fallthru
    _
  // Predicated region
  $region18: #{nn_controller_forward.1} parent=0 // pred_check
    _
  $region19: #{nn_controller_forward.1} parent=0 // pred_check_branch
    %19 = sbr.rel (0) target = $region21
  $region20: #{nn_controller_forward.1} parent=0 // pred_region
    _
  $region21: #{nn_controller_forward.1} parent=0 // pred_fallthru
    _
  %v20 = vld [vmem:[%s0] sm:$0xff]
  %v21 = vld [vmem:[%s1] sm:$0xff]
  %v22 = vld [vmem:[%s1 + $0x8] sm:$0xff]
  %v23 = vld [vmem:[%s1 + $0x10] sm:$0xff]
  %v24 = vld [vmem:[%s1 + $0x18] sm:$0xff]
  %v25 = vld [vmem:[%s1 + $0x20] sm:$0xff]
  %v26 = vld [vmem:[%s1 + $0x28] sm:$0xff]
  %v27 = vld [vmem:[%s1 + $0x30] sm:$0xff]
  %v28 = vld [vmem:[%s1 + $0x38] sm:$0xff]
  %v29 = vld [vmem:[%s1 + $0x40] sm:$0xff]
  %v30 = vld [vmem:[%s1 + $0x48] sm:$0xff]
  %v31 = vld [vmem:[%s1 + $0x50] sm:$0xff]
  %v32 = vld [vmem:[%s1 + $0x58] sm:$0xff]
  %v33 = vld [vmem:[%s1 + $0x60] sm:$0xff]
  %v34 = vld [vmem:[%s1 + $0x68] sm:$0xff]
  %v35 = vld [vmem:[%s1 + $0x70] sm:$0xff]
  %v36 = vld [vmem:[%s1 + $0x78] sm:$0xff]
  %v37 = vld [vmem:[%s1 + $0x80] sm:$0xff]
  %v38 = vld [vmem:[%s1 + $0x88] sm:$0xff]
  %v39 = vld [vmem:[%s1 + $0x90] sm:$0xff]
  %v40 = vld [vmem:[%s1 + $0x98] sm:$0xff]
  %v41 = vld [vmem:[%s1 + $0xa0] sm:$0xff]
  %v42 = vld [vmem:[%s1 + $0xa8] sm:$0xff]
  %v43 = vld [vmem:[%s1 + $0xb0] sm:$0xff]
  %v44 = vld [vmem:[%s1 + $0xb8] sm:$0xff]
  %v45 = vld [vmem:[%s2] sm:$0x1]
  %v46 = vld [vmem:[%s2 + $0x1] sm:$0x1]
  %v47 = vld [vmem:[%s2 + $0x2] sm:$0x1]
  %v48 = vld [vmem:[%s2 + $0x3] sm:$0x1]
  %v53 = vlaneseq
  %v54 = vshrl.u32 %v53, 7
  %v55 = vsub.s32 0, %v54
  %v56 = vrot.slane %v45, %v55
  %v57 = vlaneseq
  %v58 = vshrl.u32 %v57, 7
  %v59 = vsub.s32 0, %v58
  %v60 = vrot.slane %v46, %v59
  %v61 = vlaneseq
  %v62 = vshrl.u32 %v61, 7
  %v63 = vsub.s32 0, %v62
  %v64 = vrot.slane %v47, %v63
  %v65 = vlaneseq
  %v66 = vshrl.u32 %v65, 7
  %v67 = vsub.s32 0, %v66
  %v68 = vrot.slane %v48, %v67
  %vm73 = vcmask 392192
  %v75 = vsel %vm73, %v20, 0
  %77 = vmatprep.subr.mxu0 0.0
  %78 = vmatpush1.msra.mxu0 0.0
  %79 = vmatprep.subr.mxu0 0.0
  %80 = vmatpush1.msra.mxu0 0.0
  %81 = vmatprep.subr.mxu0 0.0
  %82 = vmatpush1.msra.mxu0 0.0
  %83 = vmatprep.subr.mxu0 0.0
  %84 = vmatpush1.msra.mxu0 0.0
  %85 = vmatprep.subr.mxu0 0.0
  %86 = vmatpush1.msra.mxu0 0.0
  %87 = vmatprep.subr.mxu0 0.0
  %88 = vmatpush1.msra.mxu0 0.0
  %89 = vmatprep.subr.mxu0 0.0
  %90 = vmatpush1.msra.mxu0 0.0
  %91 = vmatprep.subr.mxu0 0.0
  %92 = vmatpush1.msra.mxu0 0.0
  %93 = vmatprep.subr.mxu0 0.0
  %94 = vmatpush1.msra.mxu0 0.0
  %95 = vmatprep.subr.mxu0 0.0
  %96 = vmatpush1.msra.mxu0 0.0
  %97 = vmatprep.subr.mxu0 0.0
  %98 = vmatpush1.msra.mxu0 %v26
  %99 = vmatprep.subr.mxu0 0.0
  %100 = vmatpush1.msra.mxu0 %v25
  %101 = vmatprep.subr.mxu0 0.0
  %102 = vmatpush1.msra.mxu0 %v24
  %103 = vmatprep.subr.mxu0 0.0
  %104 = vmatpush1.msra.mxu0 %v23
  %105 = vmatprep.subr.mxu0 0.0
  %106 = vmatpush1.msra.mxu0 %v22
  %107 = vmatprep.subr.mxu0 0.0
  %108 = vmatpush1.msra.mxu0 %v21
  %109 = vmatprep.subr.mxu0 0.0
  %110 = vmatpush2.msra.mxu0 0.0
  %111 = vmatprep.subr.mxu0 0.0
  %112 = vmatpush2.msra.mxu0 0.0
  %113 = vmatprep.subr.mxu0 0.0
  %114 = vmatpush2.msra.mxu0 0.0
  %115 = vmatprep.subr.mxu0 0.0
  %116 = vmatpush2.msra.mxu0 0.0
  %117 = vmatprep.subr.mxu0 0.0
  %118 = vmatpush2.msra.mxu0 0.0
  %119 = vmatprep.subr.mxu0 0.0
  %120 = vmatpush2.msra.mxu0 0.0
  %121 = vmatprep.subr.mxu0 0.0
  %122 = vmatpush2.msra.mxu0 0.0
  %123 = vmatprep.subr.mxu0 0.0
  %124 = vmatpush2.msra.mxu0 0.0
  %125 = vmatprep.subr.mxu0 0.0
  %126 = vmatpush2.msra.mxu0 0.0
  %127 = vmatprep.subr.mxu0 0.0
  %128 = vmatpush2.msra.mxu0 0.0
  %129 = vmatprep.subr.mxu0 0.0
  %130 = vmatpush2.msra.mxu0 0.0
  %131 = vmatprep.subr.mxu0 0.0
  %132 = vmatpush2.msra.mxu0 0.0
  %133 = vmatprep.subr.mxu0 0.0
  %134 = vmatpush2.msra.mxu0 0.0
  %135 = vmatprep.subr.mxu0 0.0
  %136 = vmatpush2.msra.mxu0 0.0
  %137 = vmatprep.subr.mxu0 0.0
  %138 = vmatpush2.msra.mxu0 0.0
  %139 = vmatprep.subr.mxu0 0.0
  %140 = vmatpush2.msra.mxu0 0.0
  %141 = vmatprep.mubr.f32.mxu0 0.0
  %142 = vmatmul.mubr.f32.gmra.mxu0 %v75
  %v143 = vpop.f32.mrf.mxu0
  %v144 = vadd.f32 %v56, %v143
  %v145 = vpop.f32.mrf.mxu0
  %146 = vdwg.mxu0
  %147 = vmatprep.subr.mxu0 0.0
  %148 = vmatpush1.msra.mxu0 0.0
  %149 = vmatprep.subr.mxu0 0.0
  %150 = vmatpush1.msra.mxu0 0.0
  %151 = vmatprep.subr.mxu0 0.0
  %152 = vmatpush1.msra.mxu0 0.0
  %153 = vmatprep.subr.mxu0 0.0
  %154 = vmatpush1.msra.mxu0 0.0
  %155 = vmatprep.subr.mxu0 0.0
  %156 = vmatpush1.msra.mxu0 0.0
  %157 = vmatprep.subr.mxu0 0.0
  %158 = vmatpush1.msra.mxu0 0.0
  %159 = vmatprep.subr.mxu0 0.0
  %160 = vmatpush1.msra.mxu0 0.0
  %161 = vmatprep.subr.mxu0 0.0
  %162 = vmatpush1.msra.mxu0 0.0
  %163 = vmatprep.subr.mxu0 0.0
  %164 = vmatpush1.msra.mxu0 0.0
  %165 = vmatprep.subr.mxu0 0.0
  %166 = vmatpush1.msra.mxu0 0.0
  %167 = vmatprep.subr.mxu0 0.0
  %168 = vmatpush1.msra.mxu0 %v32
  %169 = vmatprep.subr.mxu0 0.0
  %170 = vmatpush1.msra.mxu0 %v31
  %171 = vmatprep.subr.mxu0 0.0
  %172 = vmatpush1.msra.mxu0 %v30
  %173 = vmatprep.subr.mxu0 0.0
  %174 = vmatpush1.msra.mxu0 %v29
  %175 = vmatprep.subr.mxu0 0.0
  %176 = vmatpush1.msra.mxu0 %v28
  %177 = vmatprep.subr.mxu0 0.0
  %178 = vmatpush1.msra.mxu0 %v27
  %179 = vmatprep.subr.mxu0 0.0
  %180 = vmatpush2.msra.mxu0 0.0
  %181 = vmatprep.subr.mxu0 0.0
  %182 = vmatpush2.msra.mxu0 0.0
  %183 = vmatprep.subr.mxu0 0.0
  %184 = vmatpush2.msra.mxu0 0.0
  %185 = vmatprep.subr.mxu0 0.0
  %186 = vmatpush2.msra.mxu0 0.0
  %187 = vmatprep.subr.mxu0 0.0
  %188 = vmatpush2.msra.mxu0 0.0
  %189 = vmatprep.subr.mxu0 0.0
  %190 = vmatpush2.msra.mxu0 0.0
  %191 = vmatprep.subr.mxu0 0.0
  %192 = vmatpush2.msra.mxu0 0.0
  %193 = vmatprep.subr.mxu0 0.0
  %194 = vmatpush2.msra.mxu0 0.0
  %195 = vmatprep.subr.mxu0 0.0
  %196 = vmatpush2.msra.mxu0 0.0
  %197 = vmatprep.subr.mxu0 0.0
  %198 = vmatpush2.msra.mxu0 0.0
  %199 = vmatprep.subr.mxu0 0.0
  %200 = vmatpush2.msra.mxu0 0.0
  %201 = vmatprep.subr.mxu0 0.0
  %202 = vmatpush2.msra.mxu0 0.0
  %203 = vmatprep.subr.mxu0 0.0
  %204 = vmatpush2.msra.mxu0 0.0
  %205 = vmatprep.subr.mxu0 0.0
  %206 = vmatpush2.msra.mxu0 0.0
  %207 = vmatprep.subr.mxu0 0.0
  %208 = vmatpush2.msra.mxu0 0.0
  %209 = vmatprep.subr.mxu0 0.0
  %210 = vmatpush2.msra.mxu0 0.0
  %211 = vmatprep.mubr.f32.mxu0 0.0
  %212 = vmatmul.mubr.f32.gmra.mxu0 %v75
  %v213 = vpop.f32.mrf.mxu0
  %v214 = vadd.f32 %v60, %v213
  %v215 = vpop.f32.mrf.mxu0
  %216 = vdwg.mxu0
  %217 = vmatprep.subr.mxu0 0.0
  %218 = vmatpush1.msra.mxu0 0.0
  %219 = vmatprep.subr.mxu0 0.0
  %220 = vmatpush1.msra.mxu0 0.0
  %221 = vmatprep.subr.mxu0 0.0
  %222 = vmatpush1.msra.mxu0 0.0
  %223 = vmatprep.subr.mxu0 0.0
  %224 = vmatpush1.msra.mxu0 0.0
  %225 = vmatprep.subr.mxu0 0.0
  %226 = vmatpush1.msra.mxu0 0.0
  %227 = vmatprep.subr.mxu0 0.0
  %228 = vmatpush1.msra.mxu0 0.0
  %229 = vmatprep.subr.mxu0 0.0
  %230 = vmatpush1.msra.mxu0 0.0
  %231 = vmatprep.subr.mxu0 0.0
  %232 = vmatpush1.msra.mxu0 0.0
  %233 = vmatprep.subr.mxu0 0.0
  %234 = vmatpush1.msra.mxu0 0.0
  %235 = vmatprep.subr.mxu0 0.0
  %236 = vmatpush1.msra.mxu0 0.0
  %237 = vmatprep.subr.mxu0 0.0
  %238 = vmatpush1.msra.mxu0 %v38
  %239 = vmatprep.subr.mxu0 0.0
  %240 = vmatpush1.msra.mxu0 %v37
  %241 = vmatprep.subr.mxu0 0.0
  %242 = vmatpush1.msra.mxu0 %v36
  %243 = vmatprep.subr.mxu0 0.0
  %244 = vmatpush1.msra.mxu0 %v35
  %245 = vmatprep.subr.mxu0 0.0
  %246 = vmatpush1.msra.mxu0 %v34
  %247 = vmatprep.subr.mxu0 0.0
  %248 = vmatpush1.msra.mxu0 %v33
  %249 = vmatprep.subr.mxu0 0.0
  %250 = vmatpush2.msra.mxu0 0.0
  %251 = vmatprep.subr.mxu0 0.0
  %252 = vmatpush2.msra.mxu0 0.0
  %253 = vmatprep.subr.mxu0 0.0
  %254 = vmatpush2.msra.mxu0 0.0
  %255 = vmatprep.subr.mxu0 0.0
  %256 = vmatpush2.msra.mxu0 0.0
  %257 = vmatprep.subr.mxu0 0.0
  %258 = vmatpush2.msra.mxu0 0.0
  %259 = vmatprep.subr.mxu0 0.0
  %260 = vmatpush2.msra.mxu0 0.0
  %261 = vmatprep.subr.mxu0 0.0
  %262 = vmatpush2.msra.mxu0 0.0
  %263 = vmatprep.subr.mxu0 0.0
  %264 = vmatpush2.msra.mxu0 0.0
  %265 = vmatprep.subr.mxu0 0.0
  %266 = vmatpush2.msra.mxu0 0.0
  %267 = vmatprep.subr.mxu0 0.0
  %268 = vmatpush2.msra.mxu0 0.0
  %269 = vmatprep.subr.mxu0 0.0
  %270 = vmatpush2.msra.mxu0 0.0
  %271 = vmatprep.subr.mxu0 0.0
  %272 = vmatpush2.msra.mxu0 0.0
  %273 = vmatprep.subr.mxu0 0.0
  %274 = vmatpush2.msra.mxu0 0.0
  %275 = vmatprep.subr.mxu0 0.0
  %276 = vmatpush2.msra.mxu0 0.0
  %277 = vmatprep.subr.mxu0 0.0
  %278 = vmatpush2.msra.mxu0 0.0
  %279 = vmatprep.subr.mxu0 0.0
  %280 = vmatpush2.msra.mxu0 0.0
  %281 = vmatprep.mubr.f32.mxu0 0.0
  %282 = vmatmul.mubr.f32.gmra.mxu0 %v75
  %v283 = vpop.f32.mrf.mxu0
  %v284 = vadd.f32 %v64, %v283
  %v285 = vpop.f32.mrf.mxu0
  %286 = vdwg.mxu0
  %287 = vmatprep.subr.mxu0 0.0
  %288 = vmatpush1.msra.mxu0 0.0
  %289 = vmatprep.subr.mxu0 0.0
  %290 = vmatpush1.msra.mxu0 0.0
  %291 = vmatprep.subr.mxu0 0.0
  %292 = vmatpush1.msra.mxu0 0.0
  %293 = vmatprep.subr.mxu0 0.0
  %294 = vmatpush1.msra.mxu0 0.0
  %295 = vmatprep.subr.mxu0 0.0
  %296 = vmatpush1.msra.mxu0 0.0
  %297 = vmatprep.subr.mxu0 0.0
  %298 = vmatpush1.msra.mxu0 0.0
  %299 = vmatprep.subr.mxu0 0.0
  %300 = vmatpush1.msra.mxu0 0.0
  %301 = vmatprep.subr.mxu0 0.0
  %302 = vmatpush1.msra.mxu0 0.0
  %303 = vmatprep.subr.mxu0 0.0
  %304 = vmatpush1.msra.mxu0 0.0
  %305 = vmatprep.subr.mxu0 0.0
  %306 = vmatpush1.msra.mxu0 0.0
  %307 = vmatprep.subr.mxu0 0.0
  %308 = vmatpush1.msra.mxu0 %v44
  %309 = vmatprep.subr.mxu0 0.0
  %310 = vmatpush1.msra.mxu0 %v43
  %311 = vmatprep.subr.mxu0 0.0
  %312 = vmatpush1.msra.mxu0 %v42
  %313 = vmatprep.subr.mxu0 0.0
  %314 = vmatpush1.msra.mxu0 %v41
  %315 = vmatprep.subr.mxu0 0.0
  %316 = vmatpush1.msra.mxu0 %v40
  %317 = vmatprep.subr.mxu0 0.0
  %318 = vmatpush1.msra.mxu0 %v39
  %319 = vmatprep.subr.mxu0 0.0
  %320 = vmatpush2.msra.mxu0 0.0
  %321 = vmatprep.subr.mxu0 0.0
  %322 = vmatpush2.msra.mxu0 0.0
  %323 = vmatprep.subr.mxu0 0.0
  %324 = vmatpush2.msra.mxu0 0.0
  %325 = vmatprep.subr.mxu0 0.0
  %326 = vmatpush2.msra.mxu0 0.0
  %327 = vmatprep.subr.mxu0 0.0
  %328 = vmatpush2.msra.mxu0 0.0
  %329 = vmatprep.subr.mxu0 0.0
  %330 = vmatpush2.msra.mxu0 0.0
  %331 = vmatprep.subr.mxu0 0.0
  %332 = vmatpush2.msra.mxu0 0.0
  %333 = vmatprep.subr.mxu0 0.0
  %334 = vmatpush2.msra.mxu0 0.0
  %335 = vmatprep.subr.mxu0 0.0
  %336 = vmatpush2.msra.mxu0 0.0
  %337 = vmatprep.subr.mxu0 0.0
  %338 = vmatpush2.msra.mxu0 0.0
  %339 = vmatprep.subr.mxu0 0.0
  %340 = vmatpush2.msra.mxu0 0.0
  %341 = vmatprep.subr.mxu0 0.0
  %342 = vmatpush2.msra.mxu0 0.0
  %343 = vmatprep.subr.mxu0 0.0
  %344 = vmatpush2.msra.mxu0 0.0
  %345 = vmatprep.subr.mxu0 0.0
  %346 = vmatpush2.msra.mxu0 0.0
  %347 = vmatprep.subr.mxu0 0.0
  %348 = vmatpush2.msra.mxu0 0.0
  %349 = vmatprep.subr.mxu0 0.0
  %350 = vmatpush2.msra.mxu0 0.0
  %351 = vmatprep.mubr.f32.mxu0 0.0
  %352 = vmatmul.mubr.f32.gmra.mxu0 %v75
  %v353 = vpop.f32.mrf.mxu0
  %v354 = vadd.f32 %v68, %v353
  %v355 = vpop.f32.mrf.mxu0
  %356 = vdwg.mxu0
  %v357 = vld [vmem:[%s3] sm:$0xff]
  %v358 = vld [vmem:[%s3 + $0x8] sm:$0xff]
  %v359 = vld [vmem:[%s3 + $0x10] sm:$0xff]
  %v360 = vld [vmem:[%s3 + $0x18] sm:$0xff]
  %v361 = vld [vmem:[%s3 + $0x20] sm:$0xff]
  %v362 = vld [vmem:[%s3 + $0x28] sm:$0xff]
  %v363 = vld [vmem:[%s3 + $0x30] sm:$0xff]
  %v364 = vld [vmem:[%s3 + $0x38] sm:$0xff]
  %v365 = vld [vmem:[%s3 + $0x40] sm:$0xff]
  %v366 = vld [vmem:[%s3 + $0x48] sm:$0xff]
  %v367 = vld [vmem:[%s3 + $0x50] sm:$0xff]
  %v368 = vld [vmem:[%s3 + $0x58] sm:$0xff]
  %v369 = vld [vmem:[%s3 + $0x60] sm:$0xff]
  %v370 = vld [vmem:[%s3 + $0x68] sm:$0xff]
  %v371 = vld [vmem:[%s3 + $0x70] sm:$0xff]
  %v372 = vld [vmem:[%s3 + $0x78] sm:$0xff]
  %v373 = vld [vmem:[%s3 + $0x100] sm:$0xff]
  %v374 = vld [vmem:[%s3 + $0x108] sm:$0xff]
  %v375 = vld [vmem:[%s3 + $0x110] sm:$0xff]
  %v376 = vld [vmem:[%s3 + $0x118] sm:$0xff]
  %v377 = vld [vmem:[%s3 + $0x120] sm:$0xff]
  %v378 = vld [vmem:[%s3 + $0x128] sm:$0xff]
  %v379 = vld [vmem:[%s3 + $0x130] sm:$0xff]
  %v380 = vld [vmem:[%s3 + $0x138] sm:$0xff]
  %v381 = vld [vmem:[%s3 + $0x140] sm:$0xff]
  %v382 = vld [vmem:[%s3 + $0x148] sm:$0xff]
  %v383 = vld [vmem:[%s3 + $0x150] sm:$0xff]
  %v384 = vld [vmem:[%s3 + $0x158] sm:$0xff]
  %v385 = vld [vmem:[%s3 + $0x160] sm:$0xff]
  %v386 = vld [vmem:[%s3 + $0x168] sm:$0xff]
  %v387 = vld [vmem:[%s3 + $0x170] sm:$0xff]
  %v388 = vld [vmem:[%s3 + $0x178] sm:$0xff]
  %v389 = vld [vmem:[%s3 + $0x200] sm:$0xff]
  %v390 = vld [vmem:[%s3 + $0x208] sm:$0xff]
  %v391 = vld [vmem:[%s3 + $0x210] sm:$0xff]
  %v392 = vld [vmem:[%s3 + $0x218] sm:$0xff]
  %v393 = vld [vmem:[%s3 + $0x220] sm:$0xff]
  %v394 = vld [vmem:[%s3 + $0x228] sm:$0xff]
  %v395 = vld [vmem:[%s3 + $0x230] sm:$0xff]
  %v396 = vld [vmem:[%s3 + $0x238] sm:$0xff]
  %v397 = vld [vmem:[%s3 + $0x240] sm:$0xff]
  %v398 = vld [vmem:[%s3 + $0x248] sm:$0xff]
  %v399 = vld [vmem:[%s3 + $0x250] sm:$0xff]
  %v400 = vld [vmem:[%s3 + $0x258] sm:$0xff]
  %v401 = vld [vmem:[%s3 + $0x260] sm:$0xff]
  %v402 = vld [vmem:[%s3 + $0x268] sm:$0xff]
  %v403 = vld [vmem:[%s3 + $0x270] sm:$0xff]
  %v404 = vld [vmem:[%s3 + $0x278] sm:$0xff]
  %v405 = vld [vmem:[%s3 + $0x300] sm:$0xff]
  %v406 = vld [vmem:[%s3 + $0x308] sm:$0xff]
  %v407 = vld [vmem:[%s3 + $0x310] sm:$0xff]
  %v408 = vld [vmem:[%s3 + $0x318] sm:$0xff]
  %v409 = vld [vmem:[%s3 + $0x320] sm:$0xff]
  %v410 = vld [vmem:[%s3 + $0x328] sm:$0xff]
  %v411 = vld [vmem:[%s3 + $0x330] sm:$0xff]
  %v412 = vld [vmem:[%s3 + $0x338] sm:$0xff]
  %v413 = vld [vmem:[%s3 + $0x340] sm:$0xff]
  %v414 = vld [vmem:[%s3 + $0x348] sm:$0xff]
  %v415 = vld [vmem:[%s3 + $0x350] sm:$0xff]
  %v416 = vld [vmem:[%s3 + $0x358] sm:$0xff]
  %v417 = vld [vmem:[%s3 + $0x360] sm:$0xff]
  %v418 = vld [vmem:[%s3 + $0x368] sm:$0xff]
  %v419 = vld [vmem:[%s3 + $0x370] sm:$0xff]
  %v420 = vld [vmem:[%s3 + $0x378] sm:$0xff]
  %v421 = vld [vmem:[%s3 + $0x80] sm:$0xff]
  %v422 = vld [vmem:[%s3 + $0x88] sm:$0xff]
  %v423 = vld [vmem:[%s3 + $0x90] sm:$0xff]
  %v424 = vld [vmem:[%s3 + $0x98] sm:$0xff]
  %v425 = vld [vmem:[%s3 + $0xa0] sm:$0xff]
  %v426 = vld [vmem:[%s3 + $0xa8] sm:$0xff]
  %v427 = vld [vmem:[%s3 + $0xb0] sm:$0xff]
  %v428 = vld [vmem:[%s3 + $0xb8] sm:$0xff]
  %v429 = vld [vmem:[%s3 + $0x180] sm:$0xff]
  %v430 = vld [vmem:[%s3 + $0x188] sm:$0xff]
  %v431 = vld [vmem:[%s3 + $0x190] sm:$0xff]
  %v432 = vld [vmem:[%s3 + $0x198] sm:$0xff]
  %v433 = vld [vmem:[%s3 + $0x1a0] sm:$0xff]
  %v434 = vld [vmem:[%s3 + $0x1a8] sm:$0xff]
  %v435 = vld [vmem:[%s3 + $0x1b0] sm:$0xff]
  %v436 = vld [vmem:[%s3 + $0x1b8] sm:$0xff]
  %v437 = vld [vmem:[%s3 + $0x280] sm:$0xff]
  %v438 = vld [vmem:[%s3 + $0x288] sm:$0xff]
  %v439 = vld [vmem:[%s3 + $0x290] sm:$0xff]
  %v440 = vld [vmem:[%s3 + $0x298] sm:$0xff]
  %v441 = vld [vmem:[%s3 + $0x2a0] sm:$0xff]
  %v442 = vld [vmem:[%s3 + $0x2a8] sm:$0xff]
  %v443 = vld [vmem:[%s3 + $0x2b0] sm:$0xff]
  %v444 = vld [vmem:[%s3 + $0x2b8] sm:$0xff]
  %v445 = vld [vmem:[%s3 + $0x380] sm:$0xff]
  %v446 = vld [vmem:[%s3 + $0x388] sm:$0xff]
  %v447 = vld [vmem:[%s3 + $0x390] sm:$0xff]
  %v448 = vld [vmem:[%s3 + $0x398] sm:$0xff]
  %v449 = vld [vmem:[%s3 + $0x3a0] sm:$0xff]
  %v450 = vld [vmem:[%s3 + $0x3a8] sm:$0xff]
  %v451 = vld [vmem:[%s3 + $0x3b0] sm:$0xff]
  %v452 = vld [vmem:[%s3 + $0x3b8] sm:$0xff]
  %v453 = vld [vmem:[%s3 + $0xc0] sm:$0xff]
  %v454 = vld [vmem:[%s3 + $0xc8] sm:$0xff]
  %v455 = vld [vmem:[%s3 + $0xd0] sm:$0xff]
  %v456 = vld [vmem:[%s3 + $0xd8] sm:$0xff]
  %v457 = vld [vmem:[%s3 + $0xe0] sm:$0xff]
  %v458 = vld [vmem:[%s3 + $0xe8] sm:$0xff]
  %v459 = vld [vmem:[%s3 + $0xf0] sm:$0xff]
  %v460 = vld [vmem:[%s3 + $0xf8] sm:$0xff]
  %v461 = vld [vmem:[%s3 + $0x1c0] sm:$0xff]
  %v462 = vld [vmem:[%s3 + $0x1c8] sm:$0xff]
  %v463 = vld [vmem:[%s3 + $0x1d0] sm:$0xff]
  %v464 = vld [vmem:[%s3 + $0x1d8] sm:$0xff]
  %v465 = vld [vmem:[%s3 + $0x1e0] sm:$0xff]
  %v466 = vld [vmem:[%s3 + $0x1e8] sm:$0xff]
  %v467 = vld [vmem:[%s3 + $0x1f0] sm:$0xff]
  %v468 = vld [vmem:[%s3 + $0x1f8] sm:$0xff]
  %v469 = vld [vmem:[%s3 + $0x2c0] sm:$0xff]
  %v470 = vld [vmem:[%s3 + $0x2c8] sm:$0xff]
  %v471 = vld [vmem:[%s3 + $0x2d0] sm:$0xff]
  %v472 = vld [vmem:[%s3 + $0x2d8] sm:$0xff]
  %v473 = vld [vmem:[%s3 + $0x2e0] sm:$0xff]
  %v474 = vld [vmem:[%s3 + $0x2e8] sm:$0xff]
  %v475 = vld [vmem:[%s3 + $0x2f0] sm:$0xff]
  %v476 = vld [vmem:[%s3 + $0x2f8] sm:$0xff]
  %v477 = vld [vmem:[%s3 + $0x3c0] sm:$0xff]
  %v478 = vld [vmem:[%s3 + $0x3c8] sm:$0xff]
  %v479 = vld [vmem:[%s3 + $0x3d0] sm:$0xff]
  %v480 = vld [vmem:[%s3 + $0x3d8] sm:$0xff]
  %v481 = vld [vmem:[%s3 + $0x3e0] sm:$0xff]
  %v482 = vld [vmem:[%s3 + $0x3e8] sm:$0xff]
  %v483 = vld [vmem:[%s3 + $0x3f0] sm:$0xff]
  %v484 = vld [vmem:[%s3 + $0x3f8] sm:$0xff]
  %v485 = vld [vmem:[%s4] sm:$0x1]
  %v486 = vld [vmem:[%s4 + $0x1] sm:$0x1]
  %v487 = vld [vmem:[%s4 + $0x2] sm:$0x1]
  %v488 = vld [vmem:[%s4 + $0x3] sm:$0x1]
  %v493 = vlaneseq
  %v494 = vshrl.u32 %v493, 7
  %v495 = vsub.s32 0, %v494
  %v496 = vrot.slane %v485, %v495
  %v497 = vlaneseq
  %v498 = vshrl.u32 %v497, 7
  %v499 = vsub.s32 0, %v498
  %v500 = vrot.slane %v486, %v499
  %v501 = vlaneseq
  %v502 = vshrl.u32 %v501, 7
  %v503 = vsub.s32 0, %v502
  %v504 = vrot.slane %v487, %v503
  %v505 = vlaneseq
  %v506 = vshrl.u32 %v505, 7
  %v507 = vsub.s32 0, %v506
  %v508 = vrot.slane %v488, %v507
  %513 = vmatprep.subr.mxu0 0.0
  %514 = vmatpush1.msra.mxu0 %v372
  %515 = vmatprep.subr.mxu0 0.0
  %516 = vmatpush1.msra.mxu0 %v371
  %517 = vmatprep.subr.mxu0 0.0
  %518 = vmatpush1.msra.mxu0 %v370
  %519 = vmatprep.subr.mxu0 0.0
  %520 = vmatpush1.msra.mxu0 %v369
  %521 = vmatprep.subr.mxu0 0.0
  %522 = vmatpush1.msra.mxu0 %v368
  %523 = vmatprep.subr.mxu0 0.0
  %524 = vmatpush1.msra.mxu0 %v367
  %525 = vmatprep.subr.mxu0 0.0
  %526 = vmatpush1.msra.mxu0 %v366
  %527 = vmatprep.subr.mxu0 0.0
  %528 = vmatpush1.msra.mxu0 %v365
  %529 = vmatprep.subr.mxu0 0.0
  %530 = vmatpush1.msra.mxu0 %v364
  %531 = vmatprep.subr.mxu0 0.0
  %532 = vmatpush1.msra.mxu0 %v363
  %533 = vmatprep.subr.mxu0 0.0
  %534 = vmatpush1.msra.mxu0 %v362
  %535 = vmatprep.subr.mxu0 0.0
  %536 = vmatpush1.msra.mxu0 %v361
  %537 = vmatprep.subr.mxu0 0.0
  %538 = vmatpush1.msra.mxu0 %v360
  %539 = vmatprep.subr.mxu0 0.0
  %540 = vmatpush1.msra.mxu0 %v359
  %541 = vmatprep.subr.mxu0 0.0
  %542 = vmatpush1.msra.mxu0 %v358
  %543 = vmatprep.subr.mxu0 0.0
  %544 = vmatpush1.msra.mxu0 %v357
  %545 = vmatprep.subr.mxu0 0.0
  %546 = vmatpush2.msra.mxu0 0.0
  %547 = vmatprep.subr.mxu0 0.0
  %548 = vmatpush2.msra.mxu0 0.0
  %549 = vmatprep.subr.mxu0 0.0
  %550 = vmatpush2.msra.mxu0 0.0
  %551 = vmatprep.subr.mxu0 0.0
  %552 = vmatpush2.msra.mxu0 0.0
  %553 = vmatprep.subr.mxu0 0.0
  %554 = vmatpush2.msra.mxu0 0.0
  %555 = vmatprep.subr.mxu0 0.0
  %556 = vmatpush2.msra.mxu0 0.0
  %557 = vmatprep.subr.mxu0 0.0
  %558 = vmatpush2.msra.mxu0 0.0
  %559 = vmatprep.subr.mxu0 0.0
  %560 = vmatpush2.msra.mxu0 0.0
  %561 = vmatprep.subr.mxu0 0.0
  %562 = vmatpush2.msra.mxu0 0.0
  %563 = vmatprep.subr.mxu0 0.0
  %564 = vmatpush2.msra.mxu0 0.0
  %565 = vmatprep.subr.mxu0 0.0
  %566 = vmatpush2.msra.mxu0 0.0
  %567 = vmatprep.subr.mxu0 0.0
  %568 = vmatpush2.msra.mxu0 0.0
  %569 = vmatprep.subr.mxu0 0.0
  %570 = vmatpush2.msra.mxu0 0.0
  %571 = vmatprep.subr.mxu0 0.0
  %572 = vmatpush2.msra.mxu0 0.0
  %573 = vmatprep.subr.mxu0 0.0
  %574 = vmatpush2.msra.mxu0 0.0
  %575 = vmatprep.subr.mxu0 0.0
  %576 = vmatpush2.msra.mxu0 0.0
  %577 = vmatprep.mubr.f32.mxu0 0.0
  %578 = vmatmul.mubr.f32.gmra.mxu0 %v144
  %v579 = vpop.f32.mrf.mxu0
  %v580 = vadd.f32 %v496, %v579
  %v581 = vpop.f32.mrf.mxu0
  %582 = vdwg.mxu0
  %583 = vmatprep.subr.mxu0 0.0
  %584 = vmatpush1.msra.mxu0 %v388
  %585 = vmatprep.subr.mxu0 0.0
  %586 = vmatpush1.msra.mxu0 %v387
  %587 = vmatprep.subr.mxu0 0.0
  %588 = vmatpush1.msra.mxu0 %v386
  %589 = vmatprep.subr.mxu0 0.0
  %590 = vmatpush1.msra.mxu0 %v385
  %591 = vmatprep.subr.mxu0 0.0
  %592 = vmatpush1.msra.mxu0 %v384
  %593 = vmatprep.subr.mxu0 0.0
  %594 = vmatpush1.msra.mxu0 %v383
  %595 = vmatprep.subr.mxu0 0.0
  %596 = vmatpush1.msra.mxu0 %v382
  %597 = vmatprep.subr.mxu0 0.0
  %598 = vmatpush1.msra.mxu0 %v381
  %599 = vmatprep.subr.mxu0 0.0
  %600 = vmatpush1.msra.mxu0 %v380
  %601 = vmatprep.subr.mxu0 0.0
  %602 = vmatpush1.msra.mxu0 %v379
  %603 = vmatprep.subr.mxu0 0.0
  %604 = vmatpush1.msra.mxu0 %v378
  %605 = vmatprep.subr.mxu0 0.0
  %606 = vmatpush1.msra.mxu0 %v377
  %607 = vmatprep.subr.mxu0 0.0
  %608 = vmatpush1.msra.mxu0 %v376
  %609 = vmatprep.subr.mxu0 0.0
  %610 = vmatpush1.msra.mxu0 %v375
  %611 = vmatprep.subr.mxu0 0.0
  %612 = vmatpush1.msra.mxu0 %v374
  %613 = vmatprep.subr.mxu0 0.0
  %614 = vmatpush1.msra.mxu0 %v373
  %615 = vmatprep.subr.mxu0 0.0
  %616 = vmatpush2.msra.mxu0 0.0
  %617 = vmatprep.subr.mxu0 0.0
  %618 = vmatpush2.msra.mxu0 0.0
  %619 = vmatprep.subr.mxu0 0.0
  %620 = vmatpush2.msra.mxu0 0.0
  %621 = vmatprep.subr.mxu0 0.0
  %622 = vmatpush2.msra.mxu0 0.0
  %623 = vmatprep.subr.mxu0 0.0
  %624 = vmatpush2.msra.mxu0 0.0
  %625 = vmatprep.subr.mxu0 0.0
  %626 = vmatpush2.msra.mxu0 0.0
  %627 = vmatprep.subr.mxu0 0.0
  %628 = vmatpush2.msra.mxu0 0.0
  %629 = vmatprep.subr.mxu0 0.0
  %630 = vmatpush2.msra.mxu0 0.0
  %631 = vmatprep.subr.mxu0 0.0
  %632 = vmatpush2.msra.mxu0 0.0
  %633 = vmatprep.subr.mxu0 0.0
  %634 = vmatpush2.msra.mxu0 0.0
  %635 = vmatprep.subr.mxu0 0.0
  %636 = vmatpush2.msra.mxu0 0.0
  %637 = vmatprep.subr.mxu0 0.0
  %638 = vmatpush2.msra.mxu0 0.0
  %639 = vmatprep.subr.mxu0 0.0
  %640 = vmatpush2.msra.mxu0 0.0
  %641 = vmatprep.subr.mxu0 0.0
  %642 = vmatpush2.msra.mxu0 0.0
  %643 = vmatprep.subr.mxu0 0.0
  %644 = vmatpush2.msra.mxu0 0.0
  %645 = vmatprep.subr.mxu0 0.0
  %646 = vmatpush2.msra.mxu0 0.0
  %647 = vmatprep.mubr.f32.mxu0 0.0
  %648 = vmatmul.mubr.f32.gmra.mxu0 %v214
  %v649 = vpop.f32.mrf.mxu0
  %v650 = vadd.f32 %v500, %v649
  %v651 = vpop.f32.mrf.mxu0
  %652 = vdwg.mxu0
  %653 = vmatprep.subr.mxu0 0.0
  %654 = vmatpush1.msra.mxu0 %v404
  %655 = vmatprep.subr.mxu0 0.0
  %656 = vmatpush1.msra.mxu0 %v403
  %657 = vmatprep.subr.mxu0 0.0
  %658 = vmatpush1.msra.mxu0 %v402
  %659 = vmatprep.subr.mxu0 0.0
  %660 = vmatpush1.msra.mxu0 %v401
  %661 = vmatprep.subr.mxu0 0.0
  %662 = vmatpush1.msra.mxu0 %v400
  %663 = vmatprep.subr.mxu0 0.0
  %664 = vmatpush1.msra.mxu0 %v399
  %665 = vmatprep.subr.mxu0 0.0
  %666 = vmatpush1.msra.mxu0 %v398
  %667 = vmatprep.subr.mxu0 0.0
  %668 = vmatpush1.msra.mxu0 %v397
  %669 = vmatprep.subr.mxu0 0.0
  %670 = vmatpush1.msra.mxu0 %v396
  %671 = vmatprep.subr.mxu0 0.0
  %672 = vmatpush1.msra.mxu0 %v395
  %673 = vmatprep.subr.mxu0 0.0
  %674 = vmatpush1.msra.mxu0 %v394
  %675 = vmatprep.subr.mxu0 0.0
  %676 = vmatpush1.msra.mxu0 %v393
  %677 = vmatprep.subr.mxu0 0.0
  %678 = vmatpush1.msra.mxu0 %v392
  %679 = vmatprep.subr.mxu0 0.0
  %680 = vmatpush1.msra.mxu0 %v391
  %681 = vmatprep.subr.mxu0 0.0
  %682 = vmatpush1.msra.mxu0 %v390
  %683 = vmatprep.subr.mxu0 0.0
  %684 = vmatpush1.msra.mxu0 %v389
  %685 = vmatprep.subr.mxu0 0.0
  %686 = vmatpush2.msra.mxu0 0.0
  %687 = vmatprep.subr.mxu0 0.0
  %688 = vmatpush2.msra.mxu0 0.0
  %689 = vmatprep.subr.mxu0 0.0
  %690 = vmatpush2.msra.mxu0 0.0
  %691 = vmatprep.subr.mxu0 0.0
  %692 = vmatpush2.msra.mxu0 0.0
  %693 = vmatprep.subr.mxu0 0.0
  %694 = vmatpush2.msra.mxu0 0.0
  %695 = vmatprep.subr.mxu0 0.0
  %696 = vmatpush2.msra.mxu0 0.0
  %697 = vmatprep.subr.mxu0 0.0
  %698 = vmatpush2.msra.mxu0 0.0
  %699 = vmatprep.subr.mxu0 0.0
  %700 = vmatpush2.msra.mxu0 0.0
  %701 = vmatprep.subr.mxu0 0.0
  %702 = vmatpush2.msra.mxu0 0.0
  %703 = vmatprep.subr.mxu0 0.0
  %704 = vmatpush2.msra.mxu0 0.0
  %705 = vmatprep.subr.mxu0 0.0
  %706 = vmatpush2.msra.mxu0 0.0
  %707 = vmatprep.subr.mxu0 0.0
  %708 = vmatpush2.msra.mxu0 0.0
  %709 = vmatprep.subr.mxu0 0.0
  %710 = vmatpush2.msra.mxu0 0.0
  %711 = vmatprep.subr.mxu0 0.0
  %712 = vmatpush2.msra.mxu0 0.0
  %713 = vmatprep.subr.mxu0 0.0
  %714 = vmatpush2.msra.mxu0 0.0
  %715 = vmatprep.subr.mxu0 0.0
  %716 = vmatpush2.msra.mxu0 0.0
  %717 = vmatprep.mubr.f32.mxu0 0.0
  %718 = vmatmul.mubr.f32.gmra.mxu0 %v284
  %v719 = vpop.f32.mrf.mxu0
  %v720 = vadd.f32 %v504, %v719
  %v721 = vpop.f32.mrf.mxu0
  %722 = vdwg.mxu0
  %723 = vmatprep.subr.mxu0 0.0
  %724 = vmatpush1.msra.mxu0 %v420
  %725 = vmatprep.subr.mxu0 0.0
  %726 = vmatpush1.msra.mxu0 %v419
  %727 = vmatprep.subr.mxu0 0.0
  %728 = vmatpush1.msra.mxu0 %v418
  %729 = vmatprep.subr.mxu0 0.0
  %730 = vmatpush1.msra.mxu0 %v417
  %731 = vmatprep.subr.mxu0 0.0
  %732 = vmatpush1.msra.mxu0 %v416
  %733 = vmatprep.subr.mxu0 0.0
  %734 = vmatpush1.msra.mxu0 %v415
  %735 = vmatprep.subr.mxu0 0.0
  %736 = vmatpush1.msra.mxu0 %v414
  %737 = vmatprep.subr.mxu0 0.0
  %738 = vmatpush1.msra.mxu0 %v413
  %739 = vmatprep.subr.mxu0 0.0
  %740 = vmatpush1.msra.mxu0 %v412
  %741 = vmatprep.subr.mxu0 0.0
  %742 = vmatpush1.msra.mxu0 %v411
  %743 = vmatprep.subr.mxu0 0.0
  %744 = vmatpush1.msra.mxu0 %v410
  %745 = vmatprep.subr.mxu0 0.0
  %746 = vmatpush1.msra.mxu0 %v409
  %747 = vmatprep.subr.mxu0 0.0
  %748 = vmatpush1.msra.mxu0 %v408
  %749 = vmatprep.subr.mxu0 0.0
  %750 = vmatpush1.msra.mxu0 %v407
  %751 = vmatprep.subr.mxu0 0.0
  %752 = vmatpush1.msra.mxu0 %v406
  %753 = vmatprep.subr.mxu0 0.0
  %754 = vmatpush1.msra.mxu0 %v405
  %755 = vmatprep.subr.mxu0 0.0
  %756 = vmatpush2.msra.mxu0 0.0
  %757 = vmatprep.subr.mxu0 0.0
  %758 = vmatpush2.msra.mxu0 0.0
  %759 = vmatprep.subr.mxu0 0.0
  %760 = vmatpush2.msra.mxu0 0.0
  %761 = vmatprep.subr.mxu0 0.0
  %762 = vmatpush2.msra.mxu0 0.0
  %763 = vmatprep.subr.mxu0 0.0
  %764 = vmatpush2.msra.mxu0 0.0
  %765 = vmatprep.subr.mxu0 0.0
  %766 = vmatpush2.msra.mxu0 0.0
  %767 = vmatprep.subr.mxu0 0.0
  %768 = vmatpush2.msra.mxu0 0.0
  %769 = vmatprep.subr.mxu0 0.0
  %770 = vmatpush2.msra.mxu0 0.0
  %771 = vmatprep.subr.mxu0 0.0
  %772 = vmatpush2.msra.mxu0 0.0
  %773 = vmatprep.subr.mxu0 0.0
  %774 = vmatpush2.msra.mxu0 0.0
  %775 = vmatprep.subr.mxu0 0.0
  %776 = vmatpush2.msra.mxu0 0.0
  %777 = vmatprep.subr.mxu0 0.0
  %778 = vmatpush2.msra.mxu0 0.0
  %779 = vmatprep.subr.mxu0 0.0
  %780 = vmatpush2.msra.mxu0 0.0
  %781 = vmatprep.subr.mxu0 0.0
  %782 = vmatpush2.msra.mxu0 0.0
  %783 = vmatprep.subr.mxu0 0.0
  %784 = vmatpush2.msra.mxu0 0.0
  %785 = vmatprep.subr.mxu0 0.0
  %786 = vmatpush2.msra.mxu0 0.0
  %787 = vmatprep.mubr.f32.mxu0 0.0
  %788 = vmatmul.mubr.f32.gmra.mxu0 %v354
  %v789 = vpop.f32.mrf.mxu0
  %v790 = vadd.f32 %v508, %v789
  %v791 = vpop.f32.mrf.mxu0
  %792 = vdwg.mxu0
  %v793 = vtanh.pop %v580
  %v794 = vtanh.pop %v650
  %v795 = vtanh.pop %v720
  %v796 = vtanh.pop %v790
  %s797 = scalar_lea.vmem %s4, 4
  %v798 = vld [vmem:[%s797] sm:$0x1]
  %v799 = vld [vmem:[%s797 + $0x1] sm:$0x1]
  %v800 = vld [vmem:[%s797 + $0x2] sm:$0x1]
  %v801 = vld [vmem:[%s797 + $0x3] sm:$0x1]
  %v806 = vlaneseq
  %v807 = vshrl.u32 %v806, 7
  %v808 = vsub.s32 0, %v807
  %v809 = vrot.slane %v798, %v808
  %v810 = vlaneseq
  %v811 = vshrl.u32 %v810, 7
  %v812 = vsub.s32 0, %v811
  %v813 = vrot.slane %v799, %v812
  %v814 = vlaneseq
  %v815 = vshrl.u32 %v814, 7
  %v816 = vsub.s32 0, %v815
  %v817 = vrot.slane %v800, %v816
  %v818 = vlaneseq
  %v819 = vshrl.u32 %v818, 7
  %v820 = vsub.s32 0, %v819
  %v821 = vrot.slane %v801, %v820
  %vm826 = vcmask 523264
  %v828 = vsel %vm826, %v793, 0
  %830 = vmatprep.subr.mxu0 0.0
  %831 = vmatpush1.msra.mxu0 0.0
  %832 = vmatprep.subr.mxu0 0.0
  %833 = vmatpush1.msra.mxu0 0.0
  %834 = vmatprep.subr.mxu0 0.0
  %835 = vmatpush1.msra.mxu0 0.0
  %836 = vmatprep.subr.mxu0 0.0
  %837 = vmatpush1.msra.mxu0 0.0
  %838 = vmatprep.subr.mxu0 0.0
  %839 = vmatpush1.msra.mxu0 0.0
  %840 = vmatprep.subr.mxu0 0.0
  %841 = vmatpush1.msra.mxu0 0.0
  %842 = vmatprep.subr.mxu0 0.0
  %843 = vmatpush1.msra.mxu0 0.0
  %844 = vmatprep.subr.mxu0 0.0
  %845 = vmatpush1.msra.mxu0 0.0
  %846 = vmatprep.subr.mxu0 0.0
  %847 = vmatpush1.msra.mxu0 %v428
  %848 = vmatprep.subr.mxu0 0.0
  %849 = vmatpush1.msra.mxu0 %v427
  %850 = vmatprep.subr.mxu0 0.0
  %851 = vmatpush1.msra.mxu0 %v426
  %852 = vmatprep.subr.mxu0 0.0
  %853 = vmatpush1.msra.mxu0 %v425
  %854 = vmatprep.subr.mxu0 0.0
  %855 = vmatpush1.msra.mxu0 %v424
  %856 = vmatprep.subr.mxu0 0.0
  %857 = vmatpush1.msra.mxu0 %v423
  %858 = vmatprep.subr.mxu0 0.0
  %859 = vmatpush1.msra.mxu0 %v422
  %860 = vmatprep.subr.mxu0 0.0
  %861 = vmatpush1.msra.mxu0 %v421
  %862 = vmatprep.subr.mxu0 0.0
  %863 = vmatpush2.msra.mxu0 0.0
  %864 = vmatprep.subr.mxu0 0.0
  %865 = vmatpush2.msra.mxu0 0.0
  %866 = vmatprep.subr.mxu0 0.0
  %867 = vmatpush2.msra.mxu0 0.0
  %868 = vmatprep.subr.mxu0 0.0
  %869 = vmatpush2.msra.mxu0 0.0
  %870 = vmatprep.subr.mxu0 0.0
  %871 = vmatpush2.msra.mxu0 0.0
  %872 = vmatprep.subr.mxu0 0.0
  %873 = vmatpush2.msra.mxu0 0.0
  %874 = vmatprep.subr.mxu0 0.0
  %875 = vmatpush2.msra.mxu0 0.0
  %876 = vmatprep.subr.mxu0 0.0
  %877 = vmatpush2.msra.mxu0 0.0
  %878 = vmatprep.subr.mxu0 0.0
  %879 = vmatpush2.msra.mxu0 0.0
  %880 = vmatprep.subr.mxu0 0.0
  %881 = vmatpush2.msra.mxu0 0.0
  %882 = vmatprep.subr.mxu0 0.0
  %883 = vmatpush2.msra.mxu0 0.0
  %884 = vmatprep.subr.mxu0 0.0
  %885 = vmatpush2.msra.mxu0 0.0
  %886 = vmatprep.subr.mxu0 0.0
  %887 = vmatpush2.msra.mxu0 0.0
  %888 = vmatprep.subr.mxu0 0.0
  %889 = vmatpush2.msra.mxu0 0.0
  %890 = vmatprep.subr.mxu0 0.0
  %891 = vmatpush2.msra.mxu0 0.0
  %892 = vmatprep.subr.mxu0 0.0
  %893 = vmatpush2.msra.mxu0 0.0
  %894 = vmatprep.mubr.f32.mxu0 0.0
  %895 = vmatmul.mubr.f32.gmra.mxu0 %v828
  %v896 = vpop.f32.mrf.mxu0
  %v897 = vadd.f32 %v809, %v896
  %v898 = vpop.f32.mrf.mxu0
  %899 = vdwg.mxu0
  %v901 = vsel %vm826, %v794, 0
  %903 = vmatprep.subr.mxu0 0.0
  %904 = vmatpush1.msra.mxu0 0.0
  %905 = vmatprep.subr.mxu0 0.0
  %906 = vmatpush1.msra.mxu0 0.0
  %907 = vmatprep.subr.mxu0 0.0
  %908 = vmatpush1.msra.mxu0 0.0
  %909 = vmatprep.subr.mxu0 0.0
  %910 = vmatpush1.msra.mxu0 0.0
  %911 = vmatprep.subr.mxu0 0.0
  %912 = vmatpush1.msra.mxu0 0.0
  %913 = vmatprep.subr.mxu0 0.0
  %914 = vmatpush1.msra.mxu0 0.0
  %915 = vmatprep.subr.mxu0 0.0
  %916 = vmatpush1.msra.mxu0 0.0
  %917 = vmatprep.subr.mxu0 0.0
  %918 = vmatpush1.msra.mxu0 0.0
  %919 = vmatprep.subr.mxu0 0.0
  %920 = vmatpush1.msra.mxu0 %v436
  %921 = vmatprep.subr.mxu0 0.0
  %922 = vmatpush1.msra.mxu0 %v435
  %923 = vmatprep.subr.mxu0 0.0
  %924 = vmatpush1.msra.mxu0 %v434
  %925 = vmatprep.subr.mxu0 0.0
  %926 = vmatpush1.msra.mxu0 %v433
  %927 = vmatprep.subr.mxu0 0.0
  %928 = vmatpush1.msra.mxu0 %v432
  %929 = vmatprep.subr.mxu0 0.0
  %930 = vmatpush1.msra.mxu0 %v431
  %931 = vmatprep.subr.mxu0 0.0
  %932 = vmatpush1.msra.mxu0 %v430
  %933 = vmatprep.subr.mxu0 0.0
  %934 = vmatpush1.msra.mxu0 %v429
  %935 = vmatprep.subr.mxu0 0.0
  %936 = vmatpush2.msra.mxu0 0.0
  %937 = vmatprep.subr.mxu0 0.0
  %938 = vmatpush2.msra.mxu0 0.0
  %939 = vmatprep.subr.mxu0 0.0
  %940 = vmatpush2.msra.mxu0 0.0
  %941 = vmatprep.subr.mxu0 0.0
  %942 = vmatpush2.msra.mxu0 0.0
  %943 = vmatprep.subr.mxu0 0.0
  %944 = vmatpush2.msra.mxu0 0.0
  %945 = vmatprep.subr.mxu0 0.0
  %946 = vmatpush2.msra.mxu0 0.0
  %947 = vmatprep.subr.mxu0 0.0
  %948 = vmatpush2.msra.mxu0 0.0
  %949 = vmatprep.subr.mxu0 0.0
  %950 = vmatpush2.msra.mxu0 0.0
  %951 = vmatprep.subr.mxu0 0.0
  %952 = vmatpush2.msra.mxu0 0.0
  %953 = vmatprep.subr.mxu0 0.0
  %954 = vmatpush2.msra.mxu0 0.0
  %955 = vmatprep.subr.mxu0 0.0
  %956 = vmatpush2.msra.mxu0 0.0
  %957 = vmatprep.subr.mxu0 0.0
  %958 = vmatpush2.msra.mxu0 0.0
  %959 = vmatprep.subr.mxu0 0.0
  %960 = vmatpush2.msra.mxu0 0.0
  %961 = vmatprep.subr.mxu0 0.0
  %962 = vmatpush2.msra.mxu0 0.0
  %963 = vmatprep.subr.mxu0 0.0
  %964 = vmatpush2.msra.mxu0 0.0
  %965 = vmatprep.subr.mxu0 0.0
  %966 = vmatpush2.msra.mxu0 0.0
  %967 = vmatprep.mubr.f32.mxu0 0.0
  %968 = vmatmul.mubr.f32.gmra.mxu0 %v901
  %v969 = vpop.f32.mrf.mxu0
  %v970 = vadd.f32 %v813, %v969
  %v971 = vpop.f32.mrf.mxu0
  %972 = vdwg.mxu0
  %v974 = vsel %vm826, %v795, 0
  %976 = vmatprep.subr.mxu0 0.0
  %977 = vmatpush1.msra.mxu0 0.0
  %978 = vmatprep.subr.mxu0 0.0
  %979 = vmatpush1.msra.mxu0 0.0
  %980 = vmatprep.subr.mxu0 0.0
  %981 = vmatpush1.msra.mxu0 0.0
  %982 = vmatprep.subr.mxu0 0.0
  %983 = vmatpush1.msra.mxu0 0.0
  %984 = vmatprep.subr.mxu0 0.0
  %985 = vmatpush1.msra.mxu0 0.0
  %986 = vmatprep.subr.mxu0 0.0
  %987 = vmatpush1.msra.mxu0 0.0
  %988 = vmatprep.subr.mxu0 0.0
  %989 = vmatpush1.msra.mxu0 0.0
  %990 = vmatprep.subr.mxu0 0.0
  %991 = vmatpush1.msra.mxu0 0.0
  %992 = vmatprep.subr.mxu0 0.0
  %993 = vmatpush1.msra.mxu0 %v444
  %994 = vmatprep.subr.mxu0 0.0
  %995 = vmatpush1.msra.mxu0 %v443
  %996 = vmatprep.subr.mxu0 0.0
  %997 = vmatpush1.msra.mxu0 %v442
  %998 = vmatprep.subr.mxu0 0.0
  %999 = vmatpush1.msra.mxu0 %v441
  %1000 = vmatprep.subr.mxu0 0.0
  %1001 = vmatpush1.msra.mxu0 %v440
  %1002 = vmatprep.subr.mxu0 0.0
  %1003 = vmatpush1.msra.mxu0 %v439
  %1004 = vmatprep.subr.mxu0 0.0
  %1005 = vmatpush1.msra.mxu0 %v438
  %1006 = vmatprep.subr.mxu0 0.0
  %1007 = vmatpush1.msra.mxu0 %v437
  %1008 = vmatprep.subr.mxu0 0.0
  %1009 = vmatpush2.msra.mxu0 0.0
  %1010 = vmatprep.subr.mxu0 0.0
  %1011 = vmatpush2.msra.mxu0 0.0
  %1012 = vmatprep.subr.mxu0 0.0
  %1013 = vmatpush2.msra.mxu0 0.0
  %1014 = vmatprep.subr.mxu0 0.0
  %1015 = vmatpush2.msra.mxu0 0.0
  %1016 = vmatprep.subr.mxu0 0.0
  %1017 = vmatpush2.msra.mxu0 0.0
  %1018 = vmatprep.subr.mxu0 0.0
  %1019 = vmatpush2.msra.mxu0 0.0
  %1020 = vmatprep.subr.mxu0 0.0
  %1021 = vmatpush2.msra.mxu0 0.0
  %1022 = vmatprep.subr.mxu0 0.0
  %1023 = vmatpush2.msra.mxu0 0.0
  %1024 = vmatprep.subr.mxu0 0.0
  %1025 = vmatpush2.msra.mxu0 0.0
  %1026 = vmatprep.subr.mxu0 0.0
  %1027 = vmatpush2.msra.mxu0 0.0
  %1028 = vmatprep.subr.mxu0 0.0
  %1029 = vmatpush2.msra.mxu0 0.0
  %1030 = vmatprep.subr.mxu0 0.0
  %1031 = vmatpush2.msra.mxu0 0.0
  %1032 = vmatprep.subr.mxu0 0.0
  %1033 = vmatpush2.msra.mxu0 0.0
  %1034 = vmatprep.subr.mxu0 0.0
  %1035 = vmatpush2.msra.mxu0 0.0
  %1036 = vmatprep.subr.mxu0 0.0
  %1037 = vmatpush2.msra.mxu0 0.0
  %1038 = vmatprep.subr.mxu0 0.0
  %1039 = vmatpush2.msra.mxu0 0.0
  %1040 = vmatprep.mubr.f32.mxu0 0.0
  %1041 = vmatmul.mubr.f32.gmra.mxu0 %v974
  %v1042 = vpop.f32.mrf.mxu0
  %v1043 = vadd.f32 %v817, %v1042
  %v1044 = vpop.f32.mrf.mxu0
  %1045 = vdwg.mxu0
  %v1047 = vsel %vm826, %v796, 0
  %1049 = vmatprep.subr.mxu0 0.0
  %1050 = vmatpush1.msra.mxu0 0.0
  %1051 = vmatprep.subr.mxu0 0.0
  %1052 = vmatpush1.msra.mxu0 0.0
  %1053 = vmatprep.subr.mxu0 0.0
  %1054 = vmatpush1.msra.mxu0 0.0
  %1055 = vmatprep.subr.mxu0 0.0
  %1056 = vmatpush1.msra.mxu0 0.0
  %1057 = vmatprep.subr.mxu0 0.0
  %1058 = vmatpush1.msra.mxu0 0.0
  %1059 = vmatprep.subr.mxu0 0.0
  %1060 = vmatpush1.msra.mxu0 0.0
  %1061 = vmatprep.subr.mxu0 0.0
  %1062 = vmatpush1.msra.mxu0 0.0
  %1063 = vmatprep.subr.mxu0 0.0
  %1064 = vmatpush1.msra.mxu0 0.0
  %1065 = vmatprep.subr.mxu0 0.0
  %1066 = vmatpush1.msra.mxu0 %v452
  %1067 = vmatprep.subr.mxu0 0.0
  %1068 = vmatpush1.msra.mxu0 %v451
  %1069 = vmatprep.subr.mxu0 0.0
  %1070 = vmatpush1.msra.mxu0 %v450
  %1071 = vmatprep.subr.mxu0 0.0
  %1072 = vmatpush1.msra.mxu0 %v449
  %1073 = vmatprep.subr.mxu0 0.0
  %1074 = vmatpush1.msra.mxu0 %v448
  %1075 = vmatprep.subr.mxu0 0.0
  %1076 = vmatpush1.msra.mxu0 %v447
  %1077 = vmatprep.subr.mxu0 0.0
  %1078 = vmatpush1.msra.mxu0 %v446
  %1079 = vmatprep.subr.mxu0 0.0
  %1080 = vmatpush1.msra.mxu0 %v445
  %1081 = vmatprep.subr.mxu0 0.0
  %1082 = vmatpush2.msra.mxu0 0.0
  %1083 = vmatprep.subr.mxu0 0.0
  %1084 = vmatpush2.msra.mxu0 0.0
  %1085 = vmatprep.subr.mxu0 0.0
  %1086 = vmatpush2.msra.mxu0 0.0
  %1087 = vmatprep.subr.mxu0 0.0
  %1088 = vmatpush2.msra.mxu0 0.0
  %1089 = vmatprep.subr.mxu0 0.0
  %1090 = vmatpush2.msra.mxu0 0.0
  %1091 = vmatprep.subr.mxu0 0.0
  %1092 = vmatpush2.msra.mxu0 0.0
  %1093 = vmatprep.subr.mxu0 0.0
  %1094 = vmatpush2.msra.mxu0 0.0
  %1095 = vmatprep.subr.mxu0 0.0
  %1096 = vmatpush2.msra.mxu0 0.0
  %1097 = vmatprep.subr.mxu0 0.0
  %1098 = vmatpush2.msra.mxu0 0.0
  %1099 = vmatprep.subr.mxu0 0.0
  %1100 = vmatpush2.msra.mxu0 0.0
  %1101 = vmatprep.subr.mxu0 0.0
  %1102 = vmatpush2.msra.mxu0 0.0
  %1103 = vmatprep.subr.mxu0 0.0
  %1104 = vmatpush2.msra.mxu0 0.0
  %1105 = vmatprep.subr.mxu0 0.0
  %1106 = vmatpush2.msra.mxu0 0.0
  %1107 = vmatprep.subr.mxu0 0.0
  %1108 = vmatpush2.msra.mxu0 0.0
  %1109 = vmatprep.subr.mxu0 0.0
  %1110 = vmatpush2.msra.mxu0 0.0
  %1111 = vmatprep.subr.mxu0 0.0
  %1112 = vmatpush2.msra.mxu0 0.0
  %1113 = vmatprep.mubr.f32.mxu0 0.0
  %1114 = vmatmul.mubr.f32.gmra.mxu0 %v1047
  %v1115 = vpop.f32.mrf.mxu0
  %v1116 = vadd.f32 %v821, %v1115
  %v1117 = vpop.f32.mrf.mxu0
  %1118 = vdwg.mxu0
  %v1119 = vtanh.pop %v897
  %v1120 = vtanh.pop %v970
  %v1121 = vtanh.pop %v1043
  %v1122 = vtanh.pop %v1116
  %s1123 = scalar_lea.vmem %s4, 8
  %v1124 = vld [vmem:[%s1123] sm:$0x1]
  %v1125 = vld [vmem:[%s1123 + $0x1] sm:$0x1]
  %v1126 = vld [vmem:[%s1123 + $0x2] sm:$0x1]
  %v1127 = vld [vmem:[%s1123 + $0x3] sm:$0x1]
  %v1132 = vlaneseq
  %v1133 = vshrl.u32 %v1132, 7
  %v1134 = vsub.s32 0, %v1133
  %v1135 = vrot.slane %v1124, %v1134
  %v1136 = vlaneseq
  %v1137 = vshrl.u32 %v1136, 7
  %v1138 = vsub.s32 0, %v1137
  %v1139 = vrot.slane %v1125, %v1138
  %v1140 = vlaneseq
  %v1141 = vshrl.u32 %v1140, 7
  %v1142 = vsub.s32 0, %v1141
  %v1143 = vrot.slane %v1126, %v1142
  %v1144 = vlaneseq
  %v1145 = vshrl.u32 %v1144, 7
  %v1146 = vsub.s32 0, %v1145
  %v1147 = vrot.slane %v1127, %v1146
  %v1153 = vsel %vm826, %v1119, 0
  %1155 = vmatprep.subr.mxu0 0.0
  %1156 = vmatpush1.msra.mxu0 0.0
  %1157 = vmatprep.subr.mxu0 0.0
  %1158 = vmatpush1.msra.mxu0 0.0
  %1159 = vmatprep.subr.mxu0 0.0
  %1160 = vmatpush1.msra.mxu0 0.0
  %1161 = vmatprep.subr.mxu0 0.0
  %1162 = vmatpush1.msra.mxu0 0.0
  %1163 = vmatprep.subr.mxu0 0.0
  %1164 = vmatpush1.msra.mxu0 0.0
  %1165 = vmatprep.subr.mxu0 0.0
  %1166 = vmatpush1.msra.mxu0 0.0
  %1167 = vmatprep.subr.mxu0 0.0
  %1168 = vmatpush1.msra.mxu0 0.0
  %1169 = vmatprep.subr.mxu0 0.0
  %1170 = vmatpush1.msra.mxu0 0.0
  %1171 = vmatprep.subr.mxu0 0.0
  %1172 = vmatpush1.msra.mxu0 %v460
  %1173 = vmatprep.subr.mxu0 0.0
  %1174 = vmatpush1.msra.mxu0 %v459
  %1175 = vmatprep.subr.mxu0 0.0
  %1176 = vmatpush1.msra.mxu0 %v458
  %1177 = vmatprep.subr.mxu0 0.0
  %1178 = vmatpush1.msra.mxu0 %v457
  %1179 = vmatprep.subr.mxu0 0.0
  %1180 = vmatpush1.msra.mxu0 %v456
  %1181 = vmatprep.subr.mxu0 0.0
  %1182 = vmatpush1.msra.mxu0 %v455
  %1183 = vmatprep.subr.mxu0 0.0
  %1184 = vmatpush1.msra.mxu0 %v454
  %1185 = vmatprep.subr.mxu0 0.0
  %1186 = vmatpush1.msra.mxu0 %v453
  %1187 = vmatprep.subr.mxu0 0.0
  %1188 = vmatpush2.msra.mxu0 0.0
  %1189 = vmatprep.subr.mxu0 0.0
  %1190 = vmatpush2.msra.mxu0 0.0
  %1191 = vmatprep.subr.mxu0 0.0
  %1192 = vmatpush2.msra.mxu0 0.0
  %1193 = vmatprep.subr.mxu0 0.0
  %1194 = vmatpush2.msra.mxu0 0.0
  %1195 = vmatprep.subr.mxu0 0.0
  %1196 = vmatpush2.msra.mxu0 0.0
  %1197 = vmatprep.subr.mxu0 0.0
  %1198 = vmatpush2.msra.mxu0 0.0
  %1199 = vmatprep.subr.mxu0 0.0
  %1200 = vmatpush2.msra.mxu0 0.0
  %1201 = vmatprep.subr.mxu0 0.0
  %1202 = vmatpush2.msra.mxu0 0.0
  %1203 = vmatprep.subr.mxu0 0.0
  %1204 = vmatpush2.msra.mxu0 0.0
  %1205 = vmatprep.subr.mxu0 0.0
  %1206 = vmatpush2.msra.mxu0 0.0
  %1207 = vmatprep.subr.mxu0 0.0
  %1208 = vmatpush2.msra.mxu0 0.0
  %1209 = vmatprep.subr.mxu0 0.0
  %1210 = vmatpush2.msra.mxu0 0.0
  %1211 = vmatprep.subr.mxu0 0.0
  %1212 = vmatpush2.msra.mxu0 0.0
  %1213 = vmatprep.subr.mxu0 0.0
  %1214 = vmatpush2.msra.mxu0 0.0
  %1215 = vmatprep.subr.mxu0 0.0
  %1216 = vmatpush2.msra.mxu0 0.0
  %1217 = vmatprep.subr.mxu0 0.0
  %1218 = vmatpush2.msra.mxu0 0.0
  %1219 = vmatprep.mubr.f32.mxu0 0.0
  %1220 = vmatmul.mubr.f32.gmra.mxu0 %v1153
  %v1221 = vpop.f32.mrf.mxu0
  %v1222 = vadd.f32 %v1135, %v1221
  %v1223 = vpop.f32.mrf.mxu0
  %1224 = vdwg.mxu0
  %v1226 = vsel %vm826, %v1120, 0
  %1228 = vmatprep.subr.mxu0 0.0
  %1229 = vmatpush1.msra.mxu0 0.0
  %1230 = vmatprep.subr.mxu0 0.0
  %1231 = vmatpush1.msra.mxu0 0.0
  %1232 = vmatprep.subr.mxu0 0.0
  %1233 = vmatpush1.msra.mxu0 0.0
  %1234 = vmatprep.subr.mxu0 0.0
  %1235 = vmatpush1.msra.mxu0 0.0
  %1236 = vmatprep.subr.mxu0 0.0
  %1237 = vmatpush1.msra.mxu0 0.0
  %1238 = vmatprep.subr.mxu0 0.0
  %1239 = vmatpush1.msra.mxu0 0.0
  %1240 = vmatprep.subr.mxu0 0.0
  %1241 = vmatpush1.msra.mxu0 0.0
  %1242 = vmatprep.subr.mxu0 0.0
  %1243 = vmatpush1.msra.mxu0 0.0
  %1244 = vmatprep.subr.mxu0 0.0
  %1245 = vmatpush1.msra.mxu0 %v468
  %1246 = vmatprep.subr.mxu0 0.0
  %1247 = vmatpush1.msra.mxu0 %v467
  %1248 = vmatprep.subr.mxu0 0.0
  %1249 = vmatpush1.msra.mxu0 %v466
  %1250 = vmatprep.subr.mxu0 0.0
  %1251 = vmatpush1.msra.mxu0 %v465
  %1252 = vmatprep.subr.mxu0 0.0
  %1253 = vmatpush1.msra.mxu0 %v464
  %1254 = vmatprep.subr.mxu0 0.0
  %1255 = vmatpush1.msra.mxu0 %v463
  %1256 = vmatprep.subr.mxu0 0.0
  %1257 = vmatpush1.msra.mxu0 %v462
  %1258 = vmatprep.subr.mxu0 0.0
  %1259 = vmatpush1.msra.mxu0 %v461
  %1260 = vmatprep.subr.mxu0 0.0
  %1261 = vmatpush2.msra.mxu0 0.0
  %1262 = vmatprep.subr.mxu0 0.0
  %1263 = vmatpush2.msra.mxu0 0.0
  %1264 = vmatprep.subr.mxu0 0.0
  %1265 = vmatpush2.msra.mxu0 0.0
  %1266 = vmatprep.subr.mxu0 0.0
  %1267 = vmatpush2.msra.mxu0 0.0
  %1268 = vmatprep.subr.mxu0 0.0
  %1269 = vmatpush2.msra.mxu0 0.0
  %1270 = vmatprep.subr.mxu0 0.0
  %1271 = vmatpush2.msra.mxu0 0.0
  %1272 = vmatprep.subr.mxu0 0.0
  %1273 = vmatpush2.msra.mxu0 0.0
  %1274 = vmatprep.subr.mxu0 0.0
  %1275 = vmatpush2.msra.mxu0 0.0
  %1276 = vmatprep.subr.mxu0 0.0
  %1277 = vmatpush2.msra.mxu0 0.0
  %1278 = vmatprep.subr.mxu0 0.0
  %1279 = vmatpush2.msra.mxu0 0.0
  %1280 = vmatprep.subr.mxu0 0.0
  %1281 = vmatpush2.msra.mxu0 0.0
  %1282 = vmatprep.subr.mxu0 0.0
  %1283 = vmatpush2.msra.mxu0 0.0
  %1284 = vmatprep.subr.mxu0 0.0
  %1285 = vmatpush2.msra.mxu0 0.0
  %1286 = vmatprep.subr.mxu0 0.0
  %1287 = vmatpush2.msra.mxu0 0.0
  %1288 = vmatprep.subr.mxu0 0.0
  %1289 = vmatpush2.msra.mxu0 0.0
  %1290 = vmatprep.subr.mxu0 0.0
  %1291 = vmatpush2.msra.mxu0 0.0
  %1292 = vmatprep.mubr.f32.mxu0 0.0
  %1293 = vmatmul.mubr.f32.gmra.mxu0 %v1226
  %v1294 = vpop.f32.mrf.mxu0
  %v1295 = vadd.f32 %v1139, %v1294
  %v1296 = vpop.f32.mrf.mxu0
  %1297 = vdwg.mxu0
  %v1299 = vsel %vm826, %v1121, 0
  %1301 = vmatprep.subr.mxu0 0.0
  %1302 = vmatpush1.msra.mxu0 0.0
  %1303 = vmatprep.subr.mxu0 0.0
  %1304 = vmatpush1.msra.mxu0 0.0
  %1305 = vmatprep.subr.mxu0 0.0
  %1306 = vmatpush1.msra.mxu0 0.0
  %1307 = vmatprep.subr.mxu0 0.0
  %1308 = vmatpush1.msra.mxu0 0.0
  %1309 = vmatprep.subr.mxu0 0.0
  %1310 = vmatpush1.msra.mxu0 0.0
  %1311 = vmatprep.subr.mxu0 0.0
  %1312 = vmatpush1.msra.mxu0 0.0
  %1313 = vmatprep.subr.mxu0 0.0
  %1314 = vmatpush1.msra.mxu0 0.0
  %1315 = vmatprep.subr.mxu0 0.0
  %1316 = vmatpush1.msra.mxu0 0.0
  %1317 = vmatprep.subr.mxu0 0.0
  %1318 = vmatpush1.msra.mxu0 %v476
  %1319 = vmatprep.subr.mxu0 0.0
  %1320 = vmatpush1.msra.mxu0 %v475
  %1321 = vmatprep.subr.mxu0 0.0
  %1322 = vmatpush1.msra.mxu0 %v474
  %1323 = vmatprep.subr.mxu0 0.0
  %1324 = vmatpush1.msra.mxu0 %v473
  %1325 = vmatprep.subr.mxu0 0.0
  %1326 = vmatpush1.msra.mxu0 %v472
  %1327 = vmatprep.subr.mxu0 0.0
  %1328 = vmatpush1.msra.mxu0 %v471
  %1329 = vmatprep.subr.mxu0 0.0
  %1330 = vmatpush1.msra.mxu0 %v470
  %1331 = vmatprep.subr.mxu0 0.0
  %1332 = vmatpush1.msra.mxu0 %v469
  %1333 = vmatprep.subr.mxu0 0.0
  %1334 = vmatpush2.msra.mxu0 0.0
  %1335 = vmatprep.subr.mxu0 0.0
  %1336 = vmatpush2.msra.mxu0 0.0
  %1337 = vmatprep.subr.mxu0 0.0
  %1338 = vmatpush2.msra.mxu0 0.0
  %1339 = vmatprep.subr.mxu0 0.0
  %1340 = vmatpush2.msra.mxu0 0.0
  %1341 = vmatprep.subr.mxu0 0.0
  %1342 = vmatpush2.msra.mxu0 0.0
  %1343 = vmatprep.subr.mxu0 0.0
  %1344 = vmatpush2.msra.mxu0 0.0
  %1345 = vmatprep.subr.mxu0 0.0
  %1346 = vmatpush2.msra.mxu0 0.0
  %1347 = vmatprep.subr.mxu0 0.0
  %1348 = vmatpush2.msra.mxu0 0.0
  %1349 = vmatprep.subr.mxu0 0.0
  %1350 = vmatpush2.msra.mxu0 0.0
  %1351 = vmatprep.subr.mxu0 0.0
  %1352 = vmatpush2.msra.mxu0 0.0
  %1353 = vmatprep.subr.mxu0 0.0
  %1354 = vmatpush2.msra.mxu0 0.0
  %1355 = vmatprep.subr.mxu0 0.0
  %1356 = vmatpush2.msra.mxu0 0.0
  %1357 = vmatprep.subr.mxu0 0.0
  %1358 = vmatpush2.msra.mxu0 0.0
  %1359 = vmatprep.subr.mxu0 0.0
  %1360 = vmatpush2.msra.mxu0 0.0
  %1361 = vmatprep.subr.mxu0 0.0
  %1362 = vmatpush2.msra.mxu0 0.0
  %1363 = vmatprep.subr.mxu0 0.0
  %1364 = vmatpush2.msra.mxu0 0.0
  %1365 = vmatprep.mubr.f32.mxu0 0.0
  %1366 = vmatmul.mubr.f32.gmra.mxu0 %v1299
  %v1367 = vpop.f32.mrf.mxu0
  %v1368 = vadd.f32 %v1143, %v1367
  %v1369 = vpop.f32.mrf.mxu0
  %1370 = vdwg.mxu0
  %v1372 = vsel %vm826, %v1122, 0
  %1374 = vmatprep.subr.mxu0 0.0
  %1375 = vmatpush1.msra.mxu0 0.0
  %1376 = vmatprep.subr.mxu0 0.0
  %1377 = vmatpush1.msra.mxu0 0.0
  %1378 = vmatprep.subr.mxu0 0.0
  %1379 = vmatpush1.msra.mxu0 0.0
  %1380 = vmatprep.subr.mxu0 0.0
  %1381 = vmatpush1.msra.mxu0 0.0
  %1382 = vmatprep.subr.mxu0 0.0
  %1383 = vmatpush1.msra.mxu0 0.0
  %1384 = vmatprep.subr.mxu0 0.0
  %1385 = vmatpush1.msra.mxu0 0.0
  %1386 = vmatprep.subr.mxu0 0.0
  %1387 = vmatpush1.msra.mxu0 0.0
  %1388 = vmatprep.subr.mxu0 0.0
  %1389 = vmatpush1.msra.mxu0 0.0
  %1390 = vmatprep.subr.mxu0 0.0
  %1391 = vmatpush1.msra.mxu0 %v484
  %1392 = vmatprep.subr.mxu0 0.0
  %1393 = vmatpush1.msra.mxu0 %v483
  %1394 = vmatprep.subr.mxu0 0.0
  %1395 = vmatpush1.msra.mxu0 %v482
  %1396 = vmatprep.subr.mxu0 0.0
  %1397 = vmatpush1.msra.mxu0 %v481
  %1398 = vmatprep.subr.mxu0 0.0
  %1399 = vmatpush1.msra.mxu0 %v480
  %1400 = vmatprep.subr.mxu0 0.0
  %1401 = vmatpush1.msra.mxu0 %v479
  %1402 = vmatprep.subr.mxu0 0.0
  %1403 = vmatpush1.msra.mxu0 %v478
  %1404 = vmatprep.subr.mxu0 0.0
  %1405 = vmatpush1.msra.mxu0 %v477
  %1406 = vmatprep.subr.mxu0 0.0
  %1407 = vmatpush2.msra.mxu0 0.0
  %1408 = vmatprep.subr.mxu0 0.0
  %1409 = vmatpush2.msra.mxu0 0.0
  %1410 = vmatprep.subr.mxu0 0.0
  %1411 = vmatpush2.msra.mxu0 0.0
  %1412 = vmatprep.subr.mxu0 0.0
  %1413 = vmatpush2.msra.mxu0 0.0
  %1414 = vmatprep.subr.mxu0 0.0
  %1415 = vmatpush2.msra.mxu0 0.0
  %1416 = vmatprep.subr.mxu0 0.0
  %1417 = vmatpush2.msra.mxu0 0.0
  %1418 = vmatprep.subr.mxu0 0.0
  %1419 = vmatpush2.msra.mxu0 0.0
  %1420 = vmatprep.subr.mxu0 0.0
  %1421 = vmatpush2.msra.mxu0 0.0
  %1422 = vmatprep.subr.mxu0 0.0
  %1423 = vmatpush2.msra.mxu0 0.0
  %1424 = vmatprep.subr.mxu0 0.0
  %1425 = vmatpush2.msra.mxu0 0.0
  %1426 = vmatprep.subr.mxu0 0.0
  %1427 = vmatpush2.msra.mxu0 0.0
  %1428 = vmatprep.subr.mxu0 0.0
  %1429 = vmatpush2.msra.mxu0 0.0
  %1430 = vmatprep.subr.mxu0 0.0
  %1431 = vmatpush2.msra.mxu0 0.0
  %1432 = vmatprep.subr.mxu0 0.0
  %1433 = vmatpush2.msra.mxu0 0.0
  %1434 = vmatprep.subr.mxu0 0.0
  %1435 = vmatpush2.msra.mxu0 0.0
  %1436 = vmatprep.subr.mxu0 0.0
  %1437 = vmatpush2.msra.mxu0 0.0
  %1438 = vmatprep.mubr.f32.mxu0 0.0
  %1439 = vmatmul.mubr.f32.gmra.mxu0 %v1372
  %v1440 = vpop.f32.mrf.mxu0
  %v1441 = vadd.f32 %v1147, %v1440
  %v1442 = vpop.f32.mrf.mxu0
  %1443 = vdwg.mxu0
  %v1444 = vtanh.pop %v1222
  %v1445 = vtanh.pop %v1295
  %v1446 = vtanh.pop %v1368
  %v1447 = vtanh.pop %v1441
  %1448 = vst.msk [vmem:[%s5] sm:$0xff] %vm826, %v1444
  %1449 = vst.msk [vmem:[%s5 + $0x8] sm:$0xff] %vm826, %v1445
  %1450 = vst.msk [vmem:[%s5 + $0x10] sm:$0xff] %vm826, %v1446
  %1451 = vst.msk [vmem:[%s5 + $0x18] sm:$0xff] %vm826, %v1447
  // Predicated region
  $region22: #{nn_controller_forward.1} parent=0 // pred_check
    _
  $region23: #{nn_controller_forward.1} parent=0 // pred_check_branch
    %1453 = sbr.rel (0) target = $region25
  $region24: #{nn_controller_forward.1} parent=0 // pred_region
    _
  $region25: #{nn_controller_forward.1} parent=0 // pred_fallthru
    _
  // Predicated region
  $region26: #{nn_controller_forward.1} parent=0 // pred_check
    _
  $region27: #{nn_controller_forward.1} parent=0 // pred_check_branch
    %1455 = sbr.rel (0) target = $region29
  $region28: #{nn_controller_forward.1} parent=0 // pred_region
    _
  $region29: #{nn_controller_forward.1} parent=0 // pred_fallthru
    _

</llo_original>
